<compile_context>
chip_gen: v7x
topology: tpu7x:2x2x1
jax: 0.10.0
libtpu: 0.0.40
codegen_flags: <defaults>
</compile_context>

<pallas_src>
import functools

import jax
import jax.numpy as jnp
import numpy as np
from jax.experimental import pallas as pl
from jax.experimental.pallas import tpu as pltpu


def _attention_kernel(st_ref, ctx3_ref, ctxf_ref, wwr_ref, bwr_ref, wub_ref,
                      bur_ref, wvb_ref, bv_ref, out_ref, att_ref, *,
                      tanh_dtype=None):
    # st_ref:   (BB, S, Ds)        state block
    # ctx3_ref: (BB, C, Dc)        context block (natural layout)
    # ctxf_ref: (1, BB, C*Dc)      context block, rows flattened per batch elem
    # wwr_ref:  (Ds, C*H)          W_w tiled C times along the output dim
    # bwr_ref:  (1, C*H)
    # wub_ref:  (C*Dc, C*H)        block-diagonal expansion of W_u
    # bur_ref:  (1, C*H)
    # wvb_ref:  (C*H, C)           block-diagonal expansion of w_v
    # bv_ref:   (1, 1)
    # out_ref:  (1, BB*S, Dc)      att-weighted context
    # att_ref:  (1, BB*S, C)       attention weights
    BB, S, Ds = st_ref.shape
    _, C, Dc = ctx3_ref.shape
    CH = wwr_ref.shape[1]

    # --- input projections, flattened over the batch block (MXU matmuls) ---
    st2d = st_ref[...].reshape(BB * S, Ds)
    vs_rep = jnp.dot(st2d, wwr_ref[...],
                     preferred_element_type=jnp.float32) + bwr_ref[...]   # (BB*S, C*H)
    vc_flat = jnp.dot(ctxf_ref[0], wub_ref[...],
                      preferred_element_type=jnp.float32) + bur_ref[...]  # (BB, C*H)

    # --- additive attention pre-activation, fully lane-dense -----------------
    pre = vs_rep.reshape(BB, S, CH) + vc_flat[:, None, :]                 # (BB, S, C*H)
    if tanh_dtype is not None:
        t = jnp.tanh(pre.astype(tanh_dtype)).astype(jnp.float32)
    else:
        t = jnp.tanh(pre)

    # --- H-contraction with w_v on the MXU (no XLU lane reduce) --------------
    scores = jnp.dot(t.reshape(BB * S, CH), wvb_ref[...],
                     preferred_element_type=jnp.float32) + bv_ref[0, 0]   # (BB*S, C)

    # --- softmax over the context axis ---------------------------------------
    m = jnp.max(scores, axis=-1, keepdims=True)
    e = jnp.exp(scores - m)
    att2d = e * pl.reciprocal(jnp.sum(e, axis=-1, keepdims=True), approx=True)

    # --- attention-weighted context (batched matmul) --------------------------
    out3 = jnp.einsum("bsc,bcd->bsd", att2d.reshape(BB, S, C), ctx3_ref[...],
                      preferred_element_type=jnp.float32)                 # (BB, S, Dc)

    out_ref[0] = out3.reshape(BB * S, Dc).astype(out_ref.dtype)
    att_ref[0] = att2d.astype(att_ref.dtype)


def attention_model(context, state, params, *, block_b=None, tanh_dtype=None):
    """context: (B, C, context_size), state: (B, S, state_size).
    Returns (output_context (B, S, context_size), att_weight (B, S, C))."""
    B, C, Dc = context.shape
    B2, S, Ds = state.shape
    assert B == B2
    ww, bw = params["Ww"], params["bw"]       # (Ds, H), (1, H)
    wu, bu = params["Wu"], params["bu"]       # (Dc, H), (1, H)
    wv, bv = params["wv"], params["bv"]       # (1, H), (1, 1)
    H = ww.shape[1]
    CH = C * H

    # Batch block: amortize per-grid-step overhead; keep grid extent >= 2 when
    # possible so both v7x TensorCores get work.
    if block_b is None:
        block_b = min(B, 8)
        while B % block_b:
            block_b -= 1
        if B // block_b < 2 and B % 2 == 0 and B >= 2:
            block_b = B // 2
    assert B % block_b == 0, "batch must be divisible by block_b"
    nb = B // block_b

    # Expanded weights so the in-kernel score path is pure lane-dense matmuls.
    eye_c = jnp.eye(C, dtype=jnp.float32)
    ww_rep = jnp.tile(ww, (1, C))             # (Ds, C*H):  ww_rep[:, c*H+h] = Ww[:, h]
    bw_rep = jnp.tile(bw, (1, C))             # (1, C*H)
    wu_blk = jnp.kron(eye_c, wu)              # (C*Dc, C*H) block-diagonal
    bu_rep = jnp.tile(bu, (1, C))             # (1, C*H)
    wv_blk = jnp.kron(eye_c, wv.T)            # (C*H, C)   block-diagonal

    # Context with per-batch rows flattened (built in the wrapper: free layout
    # plumbing, avoids an in-kernel sublane->lane relayout).
    ctx_flat = context.reshape(nb, block_b, C * Dc)

    flops = (2 * B * S * Ds * CH              # state projection (tiled)
             + 2 * B * (C * Dc) * CH          # context projection (block-diag)
             + 2 * B * S * CH * C             # score contraction with w_v
             + 2 * B * S * C * Dc)            # attention-weighted context
    transcendentals = B * S * C * H + B * S * C
    bytes_accessed = 4 * (state.size + 2 * context.size + ww_rep.size +
                          bw_rep.size + wu_blk.size + bu_rep.size +
                          wv_blk.size + bv.size + B * S * Dc + B * S * C)

    in_specs = [
        pl.BlockSpec((block_b, S, Ds), lambda b: (b, 0, 0)),       # state
        pl.BlockSpec((block_b, C, Dc), lambda b: (b, 0, 0)),       # context (3D)
        pl.BlockSpec((1, block_b, C * Dc), lambda b: (b, 0, 0)),   # context (flat)
        pl.BlockSpec((Ds, CH), lambda b: (0, 0)),                  # Ww tiled
        pl.BlockSpec((1, CH), lambda b: (0, 0)),                   # bw tiled
        pl.BlockSpec((C * Dc, CH), lambda b: (0, 0)),              # Wu block-diag
        pl.BlockSpec((1, CH), lambda b: (0, 0)),                   # bu tiled
        pl.BlockSpec((CH, C), lambda b: (0, 0)),                   # wv block-diag
        pl.BlockSpec((1, 1), lambda b: (0, 0)),                    # bv
    ]
    out_specs = (
        pl.BlockSpec((1, block_b * S, Dc), lambda b: (b, 0, 0)),
        pl.BlockSpec((1, block_b * S, C), lambda b: (b, 0, 0)),
    )
    out_shape = (
        jax.ShapeDtypeStruct((nb, block_b * S, Dc), jnp.float32),
        jax.ShapeDtypeStruct((nb, block_b * S, C), jnp.float32),
    )

    out_flat, att_flat = pl.pallas_call(
        functools.partial(_attention_kernel, tanh_dtype=tanh_dtype),
        out_shape=out_shape,
        grid=(nb,),
        in_specs=in_specs,
        out_specs=out_specs,
        compiler_params=pltpu.CompilerParams(
            dimension_semantics=("parallel",),
            vmem_limit_bytes=32 * 1024 * 1024),
        cost_estimate=pl.CostEstimate(
            flops=int(flops),
            transcendentals=int(transcendentals),
            bytes_accessed=int(bytes_accessed)),
    )(state, context, ctx_flat, ww_rep, bw_rep, wu_blk, bu_rep, wv_blk, bv)

    return out_flat.reshape(B, S, Dc), att_flat.reshape(B, S, C)


def _reference(context, state, params):
    # Pure-JAX reference replicating the PyTorch forward exactly.
    v_state = state @ params["Ww"] + params["bw"][0]                 # (B, S, H)
    v_context = context @ params["Wu"] + params["bu"][0]             # (B, C, H)
    t = jnp.tanh(v_state[:, :, None, :] + v_context[:, None, :, :])  # (B, S, C, H)
    scores = jnp.einsum("bsch,h->bsc", t, params["wv"][0]) + params["bv"][0, 0]
    att = jax.nn.softmax(scores, axis=-1)                            # (B, S, C)
    out = jnp.einsum("bsc,bcd->bsd", att, context)                   # (B, S, Dc)
    return out, att


if __name__ == "__main__":
    # Small shapes consistent with the module's forward.
    B = 8
    context_length = 16      # C
    state_length = 8         # S
    context_size = 16
    state_size = 16
    hidden_size = 32

    key = jax.random.PRNGKey(0)
    kc, ks, k1, k2, k3, k4, k5, k6 = jax.random.split(key, 8)

    context = jax.random.normal(kc, (B, context_length, context_size), jnp.float32)
    state = jax.random.normal(ks, (B, state_length, state_size), jnp.float32)

    # Parameters stored as (in_features, out_features) == nn.Linear weight^T.
    params = {
        "Ww": 0.1 * jax.random.normal(k1, (state_size, hidden_size), jnp.float32),
        "bw": 0.1 * jax.random.normal(k2, (1, hidden_size), jnp.float32),
        "Wu": 0.1 * jax.random.normal(k3, (context_size, hidden_size), jnp.float32),
        "bu": 0.1 * jax.random.normal(k4, (1, hidden_size), jnp.float32),
        "wv": 0.1 * jax.random.normal(k5, (1, hidden_size), jnp.float32),
        "bv": 0.1 * jax.random.normal(k6, (1, 1), jnp.float32),
    }

    out_ctx, att_w = attention_model(context, state, params, block_b=4)
    jax.block_until_ready(out_ctx)
    jax.block_until_ready(att_w)

    ref_out, ref_att = _reference(context, state, params)
    # Tolerance accounts for the approximate (EUP) softmax reciprocal.
    np.testing.assert_allclose(np.asarray(out_ctx), np.asarray(ref_out),
                               rtol=2e-3, atol=2e-3)
    np.testing.assert_allclose(np.asarray(att_w), np.asarray(ref_att),
                               rtol=2e-3, atol=2e-3)

    assert out_ctx.shape == (B, state_length, context_size)
    assert att_w.shape == (B, state_length, context_length)
    print("KERNEL_OK")
</pallas_src>

<mosaic_0001>
module attributes {stable_mosaic.version = 11 : i64} {
  func.func @_attention_kernel(%arg0: i32, %arg1: memref<4x8x16xf32, #tpu.memory_space<vmem>>, %arg2: memref<4x16x16xf32, #tpu.memory_space<vmem>>, %arg3: memref<1x4x256xf32, #tpu.memory_space<vmem>>, %arg4: memref<16x512xf32, #tpu.memory_space<vmem>>, %arg5: memref<1x512xf32, #tpu.memory_space<vmem>>, %arg6: memref<256x512xf32, #tpu.memory_space<vmem>>, %arg7: memref<1x512xf32, #tpu.memory_space<vmem>>, %arg8: memref<512x16xf32, #tpu.memory_space<vmem>>, %arg9: memref<1x1xf32, #tpu.memory_space<vmem>>, %arg10: memref<1x32x16xf32, #tpu.memory_space<vmem>>, %arg11: memref<1x32x16xf32, #tpu.memory_space<vmem>>) attributes {dimension_semantics = [#tpu.dimension_semantics<parallel>], iteration_bounds = array<i64: 2>, scalar_prefetch = 0 : i64, scratch_operands = 0 : i64, tpu.core_type = #tpu.core_type<tc>, window_params = [{transform_indices = @transform_0, window_bounds = array<i64: 4, 8, 16>}, {transform_indices = @transform_1, window_bounds = array<i64: 4, 16, 16>}, {transform_indices = @transform_2, window_bounds = array<i64: 1, 4, 256>}, {pipeline_mode = #tpu.pipeline_mode<synchronous>, transform_indices = @transform_3, window_bounds = array<i64: 16, 512>}, {pipeline_mode = #tpu.pipeline_mode<synchronous>, transform_indices = @transform_4, window_bounds = array<i64: 1, 512>}, {pipeline_mode = #tpu.pipeline_mode<synchronous>, transform_indices = @transform_5, window_bounds = array<i64: 256, 512>}, {pipeline_mode = #tpu.pipeline_mode<synchronous>, transform_indices = @transform_6, window_bounds = array<i64: 1, 512>}, {pipeline_mode = #tpu.pipeline_mode<synchronous>, transform_indices = @transform_7, window_bounds = array<i64: 512, 16>}, {pipeline_mode = #tpu.pipeline_mode<synchronous>, transform_indices = @transform_8, window_bounds = array<i64: 1, 1>}, {transform_indices = @transform_9, window_bounds = array<i64: 1, 32, 16>}, {transform_indices = @transform_10, window_bounds = array<i64: 1, 32, 16>}]} {
    %c0 = arith.constant 0 : index
    %c0_0 = arith.constant 0 : index
    %c0_1 = arith.constant 0 : index
    %0 = vector.load %arg1[%c0, %c0_0, %c0_1] : memref<4x8x16xf32, #tpu.memory_space<vmem>>, vector<4x8x16xf32>
    %1 = vector.shape_cast %0 : vector<4x8x16xf32> to vector<32x16xf32>
    %c0_2 = arith.constant 0 : index
    %c0_3 = arith.constant 0 : index
    %2 = vector.load %arg4[%c0_2, %c0_3] : memref<16x512xf32, #tpu.memory_space<vmem>>, vector<16x512xf32>
    %cst = arith.constant dense<0.000000e+00> : vector<32x512xf32>
    %3 = tpu.matmul %1, %2, %cst {dimension_numbers = #tpu.dot_dimension_numbers<[1], [0], [0], [1], [0, 0, 1, 1], [], []>} : vector<32x16xf32>, vector<16x512xf32>, vector<32x512xf32> -> vector<32x512xf32>
    %c0_4 = arith.constant 0 : index
    %c0_5 = arith.constant 0 : index
    %4 = vector.load %arg5[%c0_4, %c0_5] : memref<1x512xf32, #tpu.memory_space<vmem>>, vector<1x512xf32>
    %5 = vector.broadcast %4 : vector<1x512xf32> to vector<32x512xf32>
    %6 = arith.addf %3, %5 : vector<32x512xf32>
    %c0_6 = arith.constant 0 : index
    %c0_7 = arith.constant 0 : index
    %c0_8 = arith.constant 0 : index
    %7 = vector.load %arg3[%c0_6, %c0_7, %c0_8] : memref<1x4x256xf32, #tpu.memory_space<vmem>>, vector<1x4x256xf32>
    %8 = vector.shape_cast %7 : vector<1x4x256xf32> to vector<4x256xf32>
    %c0_9 = arith.constant 0 : index
    %c0_10 = arith.constant 0 : index
    %9 = vector.load %arg6[%c0_9, %c0_10] : memref<256x512xf32, #tpu.memory_space<vmem>>, vector<256x512xf32>
    %cst_11 = arith.constant dense<0.000000e+00> : vector<4x512xf32>
    %10 = tpu.matmul %8, %9, %cst_11 {dimension_numbers = #tpu.dot_dimension_numbers<[1], [0], [0], [1], [0, 0, 1, 1], [], []>} : vector<4x256xf32>, vector<256x512xf32>, vector<4x512xf32> -> vector<4x512xf32>
    %c0_12 = arith.constant 0 : index
    %c0_13 = arith.constant 0 : index
    %11 = vector.load %arg7[%c0_12, %c0_13] : memref<1x512xf32, #tpu.memory_space<vmem>>, vector<1x512xf32>
    %12 = vector.broadcast %11 : vector<1x512xf32> to vector<4x512xf32>
    %13 = arith.addf %10, %12 : vector<4x512xf32>
    %14 = vector.shape_cast %6 : vector<32x512xf32> to vector<4x8x512xf32>
    %15 = vector.shape_cast %13 : vector<4x512xf32> to vector<4x1x512xf32>
    %16 = vector.broadcast %15 : vector<4x1x512xf32> to vector<4x8x512xf32>
    %17 = arith.addf %14, %16 : vector<4x8x512xf32>
    %18 = math.tanh %17 : vector<4x8x512xf32>
    %19 = vector.shape_cast %18 : vector<4x8x512xf32> to vector<32x512xf32>
    %c0_14 = arith.constant 0 : index
    %c0_15 = arith.constant 0 : index
    %20 = vector.load %arg8[%c0_14, %c0_15] : memref<512x16xf32, #tpu.memory_space<vmem>>, vector<512x16xf32>
    %cst_16 = arith.constant dense<0.000000e+00> : vector<32x16xf32>
    %21 = tpu.matmul %19, %20, %cst_16 {dimension_numbers = #tpu.dot_dimension_numbers<[1], [0], [0], [1], [0, 0, 1, 1], [], []>} : vector<32x512xf32>, vector<512x16xf32>, vector<32x16xf32> -> vector<32x16xf32>
    %c0_17 = arith.constant 0 : index
    %c0_18 = arith.constant 0 : index
    %22 = vector.load %arg9[%c0_17, %c0_18] : memref<1x1xf32, #tpu.memory_space<vmem>>, vector<1x1xf32>
    %23 = vector.extract %22[0, 0] : f32 from vector<1x1xf32>
    %24 = vector.broadcast %23 : f32 to vector<32x16xf32>
    %25 = arith.addf %21, %24 : vector<32x16xf32>
    %cst_19 = arith.constant dense<0xFF800000> : vector<32xf32>
    %26 = vector.multi_reduction <maximumf>, %25, %cst_19 [1] : vector<32x16xf32> to vector<32xf32>
    %27 = vector.shape_cast %26 : vector<32xf32> to vector<32x1xf32>
    %28 = vector.broadcast %27 : vector<32x1xf32> to vector<32x16xf32>
    %29 = arith.subf %25, %28 : vector<32x16xf32>
    %30 = math.exp %29 : vector<32x16xf32>
    %cst_20 = arith.constant dense<0.000000e+00> : vector<32xf32>
    %31 = vector.multi_reduction <add>, %30, %cst_20 [1] : vector<32x16xf32> to vector<32xf32>
    %32 = vector.shape_cast %31 : vector<32xf32> to vector<32x1xf32>
    %33 = tpu.reciprocal %32 {approx = true} : vector<32x1xf32> -> vector<32x1xf32>
    %34 = vector.broadcast %33 : vector<32x1xf32> to vector<32x16xf32>
    %35 = arith.mulf %30, %34 : vector<32x16xf32>
    %36 = vector.shape_cast %35 : vector<32x16xf32> to vector<4x8x16xf32>
    %c0_21 = arith.constant 0 : index
    %c0_22 = arith.constant 0 : index
    %c0_23 = arith.constant 0 : index
    %37 = vector.load %arg2[%c0_21, %c0_22, %c0_23] : memref<4x16x16xf32, #tpu.memory_space<vmem>>, vector<4x16x16xf32>
    "tpu.trace_start"() <{level = 10 : i32, message = "bsc,bcd->bsd"}> : () -> ()
    %cst_24 = arith.constant dense<0.000000e+00> : vector<4x8x16xf32>
    %38 = tpu.matmul %36, %37, %cst_24 {dimension_numbers = #tpu.dot_dimension_numbers<[2], [1], [1], [2], [0, 0, 0, 1, 1, 2], [0], [0]>} : vector<4x8x16xf32>, vector<4x16x16xf32>, vector<4x8x16xf32> -> vector<4x8x16xf32>
    "tpu.trace_stop"() : () -> ()
    %39 = vector.shape_cast %38 : vector<4x8x16xf32> to vector<32x16xf32>
    %c0_25 = arith.constant 0 : index
    %c0_26 = arith.constant 0 : index
    %c0_27 = arith.constant 0 : index
    %40 = vector.load %arg10[%c0_25, %c0_26, %c0_27] : memref<1x32x16xf32, #tpu.memory_space<vmem>>, vector<1x32x16xf32>
    %41 = vector.shape_cast %40 : vector<1x32x16xf32> to vector<32x16xf32>
    %42 = vector.shape_cast %39 : vector<32x16xf32> to vector<1x32x16xf32>
    tpu.vector_store %arg10[%c0_25, %c0_26, %c0_27], %42 {strides = array<i32>} : memref<1x32x16xf32, #tpu.memory_space<vmem>>, vector<1x32x16xf32>,
    %c0_28 = arith.constant 0 : index
    %c0_29 = arith.constant 0 : index
    %c0_30 = arith.constant 0 : index
    %43 = vector.load %arg11[%c0_28, %c0_29, %c0_30] : memref<1x32x16xf32, #tpu.memory_space<vmem>>, vector<1x32x16xf32>
    %44 = vector.shape_cast %43 : vector<1x32x16xf32> to vector<32x16xf32>
    %45 = vector.shape_cast %35 : vector<32x16xf32> to vector<1x32x16xf32>
    tpu.vector_store %arg11[%c0_28, %c0_29, %c0_30], %45 {strides = array<i32>} : memref<1x32x16xf32, #tpu.memory_space<vmem>>, vector<1x32x16xf32>,
    return
  }
  func.func @transform_0(%arg0: i32) -> (i32, i32, i32) {
    %c0_i32 = arith.constant 0 : i32
    %c0_i32_0 = arith.constant 0 : i32
    %c0_i32_1 = arith.constant 0 : i32
    return %arg0, %c0_i32, %c0_i32_0 : i32, i32, i32
  }
  func.func @transform_1(%arg0: i32) -> (i32, i32, i32) {
    %c0_i32 = arith.constant 0 : i32
    %c0_i32_0 = arith.constant 0 : i32
    %c0_i32_1 = arith.constant 0 : i32
    return %arg0, %c0_i32, %c0_i32_0 : i32, i32, i32
  }
  func.func @transform_2(%arg0: i32) -> (i32, i32, i32) {
    %c0_i32 = arith.constant 0 : i32
    %c0_i32_0 = arith.constant 0 : i32
    %c0_i32_1 = arith.constant 0 : i32
    return %arg0, %c0_i32, %c0_i32_0 : i32, i32, i32
  }
  func.func @transform_3(%arg0: i32) -> (i32, i32) {
    %c0_i32 = arith.constant 0 : i32
    %c0_i32_0 = arith.constant 0 : i32
    %c0_i32_1 = arith.constant 0 : i32
    return %c0_i32, %c0_i32_0 : i32, i32
  }
  func.func @transform_4(%arg0: i32) -> (i32, i32) {
    %c0_i32 = arith.constant 0 : i32
    %c0_i32_0 = arith.constant 0 : i32
    %c0_i32_1 = arith.constant 0 : i32
    return %c0_i32, %c0_i32_0 : i32, i32
  }
  func.func @transform_5(%arg0: i32) -> (i32, i32) {
    %c0_i32 = arith.constant 0 : i32
    %c0_i32_0 = arith.constant 0 : i32
    %c0_i32_1 = arith.constant 0 : i32
    return %c0_i32, %c0_i32_0 : i32, i32
  }
  func.func @transform_6(%arg0: i32) -> (i32, i32) {
    %c0_i32 = arith.constant 0 : i32
    %c0_i32_0 = arith.constant 0 : i32
    %c0_i32_1 = arith.constant 0 : i32
    return %c0_i32, %c0_i32_0 : i32, i32
  }
  func.func @transform_7(%arg0: i32) -> (i32, i32) {
    %c0_i32 = arith.constant 0 : i32
    %c0_i32_0 = arith.constant 0 : i32
    %c0_i32_1 = arith.constant 0 : i32
    return %c0_i32, %c0_i32_0 : i32, i32
  }
  func.func @transform_8(%arg0: i32) -> (i32, i32) {
    %c0_i32 = arith.constant 0 : i32
    %c0_i32_0 = arith.constant 0 : i32
    %c0_i32_1 = arith.constant 0 : i32
    return %c0_i32, %c0_i32_0 : i32, i32
  }
  func.func @transform_9(%arg0: i32) -> (i32, i32, i32) {
    %c0_i32 = arith.constant 0 : i32
    %c0_i32_0 = arith.constant 0 : i32
    %c0_i32_1 = arith.constant 0 : i32
    return %arg0, %c0_i32, %c0_i32_0 : i32, i32, i32
  }
  func.func @transform_10(%arg0: i32) -> (i32, i32, i32) {
    %c0_i32 = arith.constant 0 : i32
    %c0_i32_0 = arith.constant 0 : i32
    %c0_i32_1 = arith.constant 0 : i32
    return %arg0, %c0_i32, %c0_i32_0 : i32, i32, i32
  }
}

</mosaic_0001>

<llo_original>
// kernel: tpu_custom_call.1
$region0: #{tpu_custom_call.1}
  #allocation0 [shape = 'u32[]', space=smem, size = 0x4, offset = 0x4, fixed_abs, tag = 'smem constant byte address 0x4 - core index']
  #allocation1 [shape = 'u32[144,128]{1,0:T(1,128)}', space=vmem, size = 0x12000, scoped, tag = 'internal scratch']
  #allocation2 [shape = 'f32[1,1]{1,0:T(1,128)S(1)}', space=vmem, size = 0x200, scoped, tag = 'scoped memory for tpu_custom_call.1']
  %s0 = inlined_call_operand.vmem [shape: f32[8,8,16], index: 0, kind: input, shape index: {}]
  %s1 = inlined_call_operand.vmem [shape: f32[8,16,16], index: 1, kind: input, shape index: {}]
  %s2 = inlined_call_operand.vmem [shape: f32[2,4,256], index: 2, kind: input, shape index: {}]
  %s3 = inlined_call_operand.vmem [shape: f32[16,512], index: 3, kind: input, shape index: {}]
  %s4 = inlined_call_operand.vmem [shape: f32[1,512], index: 4, kind: input, shape index: {}]
  %s5 = inlined_call_operand.hbm [shape: f32[256,512], index: 5, kind: input, shape index: {}]
  %s6 = inlined_call_operand.vmem [shape: f32[1,512], index: 6, kind: input, shape index: {}]
  %s7 = inlined_call_operand.vmem [shape: f32[512,16], index: 7, kind: input, shape index: {}]
  %s8 = inlined_call_operand.<no memory space> [shape: f32[1,1], index: 8, kind: input, shape index: {}]
  %s9 = inlined_call_operand.vmem [shape: f32[2,32,16], index: 9, kind: output, shape index: {0}]
  %s10 = inlined_call_operand.vmem [shape: f32[2,32,16], index: 10, kind: output, shape index: {1}]
  %11 = xla_tuple %s9, %s10
  %s12 = sld [smem:[#allocation0]]
  $region81: #{tpu_custom_call.1} parent=0
    _
  %s14 = ssub.s32 1, %s12
  %s15 = scalar_select 0, %s14, %s12
  %v16 = vstv %s8
  %17 = vst [vmem:[#allocation2] sm:$0x1] %v16
  $region1: #{tpu_custom_call.1} parent=0
    #allocation3 [shape = 'u8[524288]{0}', space=vmem, size = 0x80000, scoped, tag = 'input window, operand 5, single buffered']
    #allocation4 [shape = 's32[2]{0}', space=sflag, size = 0x8, scoped, tag = 'scoped memory for tpu_custom_call.1']
    %18 = vsyncpa [#allocation4], 0
    loop: start=0, step=1, limit=4
    $region2: #{tpu_custom_call.1} parent=1 // loop_pre_header
      _
    $region3: #{tpu_custom_call.1} parent=1 // loop_header
      %s20 = sphi 0, %s24
      %p21 = scmp.ge.s32.totalorder %s20, 4
      %s30 = sphi 0, %s32
      %s33 = sphi 0, %s30
      %s34 = sphi 0, %s33
      %s50 = sphi 0, %s34
      %s56 = sphi 0, %s58
      %s59 = sphi 0, %s56
      %s60 = sphi 0, %s59
      %s76 = sphi 0, %s60
      %s82 = sphi 0, %s84
      %s85 = sphi 0, %s82
      %s86 = sphi 0, %s85
      %s102 = sphi 0, %s86
      %s106 = sphi 0, %s106
      %s108 = sphi 0, %s106
      %s109 = sphi 0, %s108
      %s123 = sphi 0, %s109
      %s127 = sphi 0, %s127
      %s129 = sphi 0, %s127
      %s130 = sphi 0, %s129
      %s144 = sphi 0, %s130
      %s148 = sphi 0, %s148
      %s150 = sphi 0, %s148
      %s151 = sphi 0, %s150
      %s165 = sphi 0, %s151
      %s169 = sphi 0, %s169
      %s171 = sphi 0, %s169
      %s172 = sphi 0, %s171
      %s186 = sphi 0, %s172
      %s190 = sphi 0, %s190
      %s192 = sphi 0, %s190
      %s193 = sphi 0, %s192
      %s207 = sphi 0, %s193
      %s211 = sphi 0, %s211
      %s213 = sphi 0, %s211
      %s214 = sphi 0, %s213
      %s228 = sphi 0, %s214
      %s234 = sphi 0, %s236
      %s237 = sphi 0, %s234
      %s238 = sphi 0, %s237
      %s254 = sphi 0, %s238
      %s260 = sphi 0, %s262
      %s263 = sphi 0, %s260
      %s264 = sphi 0, %s263
      %s280 = sphi 0, %s264
    $region4: #{tpu_custom_call.1} parent=1 // loop_header_branch
      %23 = sbr.rel (%p21) target = $region8
    $region5: #{tpu_custom_call.1} parent=1 // loop_body
      %s25 = ssub.s32 %s20, 1
      %s26 = ssub.s32 %s20, 2
      %s27 = sadd.s32 %s20, 1
      %s28 = ssub.s32 %s20, %s27
      %p29 = scmp.eq.s32.totalorder %s28, 0
      %s31 = sadd.s32 %s30, 1
      %s32 = scalar_select %p29, %s30, %s31
      %p35 = pneg %p29
      %p36 = scmp.eq.s32.totalorder %s20, 1
      %p37 = por %p35, %p36
      %p38 = scmp.ne.s32.totalorder %s30, %s33
      %p39 = scmp.eq.s32.totalorder %s20, 0
      %p40 = por %p38, %p39
      %p41 = scmp.ne.s32.totalorder %s30, %s33
      %p42 = scmp.eq.s32.totalorder %s25, 1
      %p43 = por %p41, %p42
      %p44 = scmp.ne.s32.totalorder %s33, %s34
      %p45 = scmp.eq.s32.totalorder %s25, 0
      %p46 = por %p44, %p45
      %p47 = scmp.ne.s32.totalorder %s33, %s34
      %p48 = scmp.eq.s32.totalorder %s26, 1
      %p49 = por %p47, %p48
      %p51 = scmp.ne.s32.totalorder %s34, %s50
      %p52 = scmp.eq.s32.totalorder %s26, 0
      %p53 = por %p51, %p52
      %s54 = ssub.s32 %s20, %s27
      %p55 = scmp.eq.s32.totalorder %s54, 0
      %s57 = sadd.s32 %s56, 1
      %s58 = scalar_select %p55, %s56, %s57
      %p61 = pneg %p55
      %p62 = scmp.eq.s32.totalorder %s20, 1
      %p63 = por %p61, %p62
      %p64 = scmp.ne.s32.totalorder %s56, %s59
      %p65 = scmp.eq.s32.totalorder %s20, 0
      %p66 = por %p64, %p65
      %p67 = scmp.ne.s32.totalorder %s56, %s59
      %p68 = scmp.eq.s32.totalorder %s25, 1
      %p69 = por %p67, %p68
      %p70 = scmp.ne.s32.totalorder %s59, %s60
      %p71 = scmp.eq.s32.totalorder %s25, 0
      %p72 = por %p70, %p71
      %p73 = scmp.ne.s32.totalorder %s59, %s60
      %p74 = scmp.eq.s32.totalorder %s26, 1
      %p75 = por %p73, %p74
      %p77 = scmp.ne.s32.totalorder %s60, %s76
      %p78 = scmp.eq.s32.totalorder %s26, 0
      %p79 = por %p77, %p78
      %s80 = ssub.s32 %s20, %s27
      %p81 = scmp.eq.s32.totalorder %s80, 0
      %s83 = sadd.s32 %s82, 1
      %s84 = scalar_select %p81, %s82, %s83
      %p87 = pneg %p81
      %p88 = scmp.eq.s32.totalorder %s20, 1
      %p89 = por %p87, %p88
      %p90 = scmp.ne.s32.totalorder %s82, %s85
      %p91 = scmp.eq.s32.totalorder %s20, 0
      %p92 = por %p90, %p91
      %p93 = scmp.ne.s32.totalorder %s82, %s85
      %p94 = scmp.eq.s32.totalorder %s25, 1
      %p95 = por %p93, %p94
      %p96 = scmp.ne.s32.totalorder %s85, %s86
      %p97 = scmp.eq.s32.totalorder %s25, 0
      %p98 = por %p96, %p97
      %p99 = scmp.ne.s32.totalorder %s85, %s86
      %p100 = scmp.eq.s32.totalorder %s26, 1
      %p101 = por %p99, %p100
      %p103 = scmp.ne.s32.totalorder %s86, %s102
      %p104 = scmp.eq.s32.totalorder %s26, 0
      %p105 = por %p103, %p104
      %s107 = sadd.s32 %s106, 1
      %p110 = scmp.eq.s32.totalorder %s20, 1
      %p111 = scmp.ne.s32.totalorder %s106, %s108
      %p112 = scmp.eq.s32.totalorder %s20, 0
      %p113 = por %p111, %p112
      %p114 = scmp.ne.s32.totalorder %s106, %s108
      %p115 = scmp.eq.s32.totalorder %s25, 1
      %p116 = por %p114, %p115
      %p117 = scmp.ne.s32.totalorder %s108, %s109
      %p118 = scmp.eq.s32.totalorder %s25, 0
      %p119 = por %p117, %p118
      %p120 = scmp.ne.s32.totalorder %s108, %s109
      %p121 = scmp.eq.s32.totalorder %s26, 1
      %p122 = por %p120, %p121
      %p124 = scmp.ne.s32.totalorder %s109, %s123
      %p125 = scmp.eq.s32.totalorder %s26, 0
      %p126 = por %p124, %p125
      %s128 = sadd.s32 %s127, 1
      %p131 = scmp.eq.s32.totalorder %s20, 1
      %p132 = scmp.ne.s32.totalorder %s127, %s129
      %p133 = scmp.eq.s32.totalorder %s20, 0
      %p134 = por %p132, %p133
      %p135 = scmp.ne.s32.totalorder %s127, %s129
      %p136 = scmp.eq.s32.totalorder %s25, 1
      %p137 = por %p135, %p136
      %p138 = scmp.ne.s32.totalorder %s129, %s130
      %p139 = scmp.eq.s32.totalorder %s25, 0
      %p140 = por %p138, %p139
      %p141 = scmp.ne.s32.totalorder %s129, %s130
      %p142 = scmp.eq.s32.totalorder %s26, 1
      %p143 = por %p141, %p142
      %p145 = scmp.ne.s32.totalorder %s130, %s144
      %p146 = scmp.eq.s32.totalorder %s26, 0
      %p147 = por %p145, %p146
      %s149 = sadd.s32 %s148, 1
      %p152 = scmp.eq.s32.totalorder %s20, 1
      %p153 = scmp.ne.s32.totalorder %s148, %s150
      %p154 = scmp.eq.s32.totalorder %s20, 0
      %p155 = por %p153, %p154
      %p156 = scmp.ne.s32.totalorder %s148, %s150
      %p157 = scmp.eq.s32.totalorder %s25, 1
      %p158 = por %p156, %p157
      %p159 = scmp.ne.s32.totalorder %s150, %s151
      %p160 = scmp.eq.s32.totalorder %s25, 0
      %p161 = por %p159, %p160
      %p162 = scmp.ne.s32.totalorder %s150, %s151
      %p163 = scmp.eq.s32.totalorder %s26, 1
      %p164 = por %p162, %p163
      %p166 = scmp.ne.s32.totalorder %s151, %s165
      %p167 = scmp.eq.s32.totalorder %s26, 0
      %p168 = por %p166, %p167
      %s170 = sadd.s32 %s169, 1
      %p173 = scmp.eq.s32.totalorder %s20, 1
      %p174 = scmp.ne.s32.totalorder %s169, %s171
      %p175 = scmp.eq.s32.totalorder %s20, 0
      %p176 = por %p174, %p175
      %p177 = scmp.ne.s32.totalorder %s169, %s171
      %p178 = scmp.eq.s32.totalorder %s25, 1
      %p179 = por %p177, %p178
      %p180 = scmp.ne.s32.totalorder %s171, %s172
      %p181 = scmp.eq.s32.totalorder %s25, 0
      %p182 = por %p180, %p181
      %p183 = scmp.ne.s32.totalorder %s171, %s172
      %p184 = scmp.eq.s32.totalorder %s26, 1
      %p185 = por %p183, %p184
      %p187 = scmp.ne.s32.totalorder %s172, %s186
      %p188 = scmp.eq.s32.totalorder %s26, 0
      %p189 = por %p187, %p188
      %s191 = sadd.s32 %s190, 1
      %p194 = scmp.eq.s32.totalorder %s20, 1
      %p195 = scmp.ne.s32.totalorder %s190, %s192
      %p196 = scmp.eq.s32.totalorder %s20, 0
      %p197 = por %p195, %p196
      %p198 = scmp.ne.s32.totalorder %s190, %s192
      %p199 = scmp.eq.s32.totalorder %s25, 1
      %p200 = por %p198, %p199
      %p201 = scmp.ne.s32.totalorder %s192, %s193
      %p202 = scmp.eq.s32.totalorder %s25, 0
      %p203 = por %p201, %p202
      %p204 = scmp.ne.s32.totalorder %s192, %s193
      %p205 = scmp.eq.s32.totalorder %s26, 1
      %p206 = por %p204, %p205
      %p208 = scmp.ne.s32.totalorder %s193, %s207
      %p209 = scmp.eq.s32.totalorder %s26, 0
      %p210 = por %p208, %p209
      %s212 = sadd.s32 %s211, 1
      %p215 = scmp.eq.s32.totalorder %s20, 1
      %p216 = scmp.ne.s32.totalorder %s211, %s213
      %p217 = scmp.eq.s32.totalorder %s20, 0
      %p218 = por %p216, %p217
      %p219 = scmp.ne.s32.totalorder %s211, %s213
      %p220 = scmp.eq.s32.totalorder %s25, 1
      %p221 = por %p219, %p220
      %p222 = scmp.ne.s32.totalorder %s213, %s214
      %p223 = scmp.eq.s32.totalorder %s25, 0
      %p224 = por %p222, %p223
      %p225 = scmp.ne.s32.totalorder %s213, %s214
      %p226 = scmp.eq.s32.totalorder %s26, 1
      %p227 = por %p225, %p226
      %p229 = scmp.ne.s32.totalorder %s214, %s228
      %p230 = scmp.eq.s32.totalorder %s26, 0
      %p231 = por %p229, %p230
      %s232 = ssub.s32 %s20, %s27
      %p233 = scmp.eq.s32.totalorder %s232, 0
      %s235 = sadd.s32 %s234, 1
      %s236 = scalar_select %p233, %s234, %s235
      %p239 = pneg %p233
      %p240 = scmp.eq.s32.totalorder %s20, 1
      %p241 = por %p239, %p240
      %p242 = scmp.ne.s32.totalorder %s234, %s237
      %p243 = scmp.eq.s32.totalorder %s20, 0
      %p244 = por %p242, %p243
      %p245 = scmp.ne.s32.totalorder %s234, %s237
      %p246 = scmp.eq.s32.totalorder %s25, 1
      %p247 = por %p245, %p246
      %p248 = scmp.ne.s32.totalorder %s237, %s238
      %p249 = scmp.eq.s32.totalorder %s25, 0
      %p250 = por %p248, %p249
      %p251 = scmp.ne.s32.totalorder %s237, %s238
      %p252 = scmp.eq.s32.totalorder %s26, 1
      %p253 = por %p251, %p252
      %p255 = scmp.ne.s32.totalorder %s238, %s254
      %p256 = scmp.eq.s32.totalorder %s26, 0
      %p257 = por %p255, %p256
      %s258 = ssub.s32 %s20, %s27
      %p259 = scmp.eq.s32.totalorder %s258, 0
      %s261 = sadd.s32 %s260, 1
      %s262 = scalar_select %p259, %s260, %s261
      %p265 = pneg %p259
      %p266 = scmp.eq.s32.totalorder %s20, 1
      %p267 = por %p265, %p266
      %p268 = scmp.ne.s32.totalorder %s260, %s263
      %p269 = scmp.eq.s32.totalorder %s20, 0
      %p270 = por %p268, %p269
      %p271 = scmp.ne.s32.totalorder %s260, %s263
      %p272 = scmp.eq.s32.totalorder %s25, 1
      %p273 = por %p271, %p272
      %p274 = scmp.ne.s32.totalorder %s263, %s264
      %p275 = scmp.eq.s32.totalorder %s25, 0
      %p276 = por %p274, %p275
      %p277 = scmp.ne.s32.totalorder %s263, %s264
      %p278 = scmp.eq.s32.totalorder %s26, 1
      %p279 = por %p277, %p278
      %p281 = scmp.ne.s32.totalorder %s264, %s280
      %p282 = scmp.eq.s32.totalorder %s26, 0
      %p283 = por %p281, %p282
      %p284 = scmp.le.s32.totalorder 1, %s20
      %p285 = scmp.lt.s32.totalorder %s20, 3
      %p286 = pnand %p284, %p285
      %p287 = pneg %p286
      // Predicated region
      $region9: #{tpu_custom_call.1} parent=5 // pred_check
        _
      $region10: #{tpu_custom_call.1} parent=5 // pred_check_branch
        %289 = sbr.rel (%p286) target = $region12
      $region11: #{tpu_custom_call.1} parent=5 // pred_region
        %s290 = ssub.s32 %s20, 1
        // Predicated region
        $region13: #{tpu_custom_call.1} parent=11 // pred_check
          %p291 = pneg %p119
        $region14: #{tpu_custom_call.1} parent=11 // pred_check_branch
          %293 = sbr.rel (%p291) target = $region16
        $region15: #{tpu_custom_call.1} parent=11 // pred_region
          _
        $region16: #{tpu_custom_call.1} parent=11 // pred_fallthru
          _
        // Predicated region
        $region17: #{tpu_custom_call.1} parent=11 // pred_check
          %p294 = pneg %p140
        $region18: #{tpu_custom_call.1} parent=11 // pred_check_branch
          %296 = sbr.rel (%p294) target = $region20
        $region19: #{tpu_custom_call.1} parent=11 // pred_region
          _
        $region20: #{tpu_custom_call.1} parent=11 // pred_fallthru
          _
        // Predicated region
        $region21: #{tpu_custom_call.1} parent=11 // pred_check
          %p297 = pneg %p161
        $region22: #{tpu_custom_call.1} parent=11 // pred_check_branch
          %299 = sbr.rel (%p297) target = $region24
        $region23: #{tpu_custom_call.1} parent=11 // pred_region
          %s301 = ssub.s32 16384, 16384
          %302 = vsyncadd [#allocation4], %s301
          %s303 = sshll.u32 [#allocation3], 4
          %s304 = int_to_ptr.vmem [resolvable:$true] %s303
          %309 = dma.hbm_to_vmem [thread:$0]  %s5, 16384, %s304, [#allocation4], 512, 512, 32
        $region24: #{tpu_custom_call.1} parent=11 // pred_fallthru
          _
        // Predicated region
        $region25: #{tpu_custom_call.1} parent=11 // pred_check
          %p310 = pneg %p182
        $region26: #{tpu_custom_call.1} parent=11 // pred_check_branch
          %312 = sbr.rel (%p310) target = $region28
        $region27: #{tpu_custom_call.1} parent=11 // pred_region
          _
        $region28: #{tpu_custom_call.1} parent=11 // pred_fallthru
          _
        // Predicated region
        $region29: #{tpu_custom_call.1} parent=11 // pred_check
          %p313 = pneg %p203
        $region30: #{tpu_custom_call.1} parent=11 // pred_check_branch
          %315 = sbr.rel (%p313) target = $region32
        $region31: #{tpu_custom_call.1} parent=11 // pred_region
          _
        $region32: #{tpu_custom_call.1} parent=11 // pred_fallthru
          _
        // Predicated region
        $region33: #{tpu_custom_call.1} parent=11 // pred_check
          %p316 = pneg %p224
        $region34: #{tpu_custom_call.1} parent=11 // pred_check_branch
          %318 = sbr.rel (%p316) target = $region36
        $region35: #{tpu_custom_call.1} parent=11 // pred_region
          _
        $region36: #{tpu_custom_call.1} parent=11 // pred_fallthru
          _
      $region12: #{tpu_custom_call.1} parent=5 // pred_fallthru
        _
      %p319 = scmp.lt.s32.totalorder %s20, 2
      // Predicated region
      $region37: #{tpu_custom_call.1} parent=5 // pred_check
        %p320 = pneg %p319
      $region38: #{tpu_custom_call.1} parent=5 // pred_check_branch
        %322 = sbr.rel (%p320) target = $region40
      $region39: #{tpu_custom_call.1} parent=5 // pred_region
        // Predicated region
        $region41: #{tpu_custom_call.1} parent=39 // pred_check
          %p323 = pneg %p40
        $region42: #{tpu_custom_call.1} parent=39 // pred_check_branch
          %325 = sbr.rel (%p323) target = $region44
        $region43: #{tpu_custom_call.1} parent=39 // pred_region
          %s326 = smul.u32 4, %s20
          %p327 = scmp.lt.s32.totalorder %s326, 7
          %s328 = scalar_select %p327, %s326, 7
          %s329 = smul.addr %s328, 8
          %s330 = scalar_lea.vmem %s0, %s329
          %s331 = smul.u32 4, %s20
        $region44: #{tpu_custom_call.1} parent=39 // pred_fallthru
          _
        // Predicated region
        $region45: #{tpu_custom_call.1} parent=39 // pred_check
          %p332 = pneg %p66
        $region46: #{tpu_custom_call.1} parent=39 // pred_check_branch
          %334 = sbr.rel (%p332) target = $region48
        $region47: #{tpu_custom_call.1} parent=39 // pred_region
          %s335 = smul.u32 4, %s20
          %p336 = scmp.lt.s32.totalorder %s335, 7
          %s337 = scalar_select %p336, %s335, 7
          %s338 = smul.addr %s337, 2
          %s339 = smul.addr %s338, 8
          %s340 = scalar_lea.vmem %s1, %s339
          %s341 = smul.u32 4, %s20
        $region48: #{tpu_custom_call.1} parent=39 // pred_fallthru
          _
        // Predicated region
        $region49: #{tpu_custom_call.1} parent=39 // pred_check
          %p342 = pneg %p92
        $region50: #{tpu_custom_call.1} parent=39 // pred_check_branch
          %344 = sbr.rel (%p342) target = $region52
        $region51: #{tpu_custom_call.1} parent=39 // pred_region
          %p345 = scmp.lt.s32.totalorder %s20, 1
          %s346 = scalar_select %p345, %s20, 1
          %s347 = smul.addr %s346, 2
          %s348 = smul.addr %s347, 4
          %s349 = scalar_lea.vmem %s2, %s348
        $region52: #{tpu_custom_call.1} parent=39 // pred_fallthru
          _
      $region40: #{tpu_custom_call.1} parent=5 // pred_fallthru
        _
      %p350 = scmp.le.s32.totalorder 1, %s20
      %p351 = scmp.lt.s32.totalorder %s20, 3
      %p352 = pnand %p350, %p351
      %p353 = pneg %p352
      // Predicated region
      $region53: #{tpu_custom_call.1} parent=5 // pred_check
        _
      $region54: #{tpu_custom_call.1} parent=5 // pred_check_branch
        %355 = sbr.rel (%p352) target = $region56
      $region55: #{tpu_custom_call.1} parent=5 // pred_region
        %s356 = ssub.s32 %s20, 1
        // Predicated region
        $region57: #{tpu_custom_call.1} parent=55 // pred_check
          %p357 = pneg %p161
        $region58: #{tpu_custom_call.1} parent=55 // pred_check_branch
          %359 = sbr.rel (%p357) target = $region60
        $region59: #{tpu_custom_call.1} parent=55 // pred_region
          %360 = dma.done [#allocation4], 16384
        $region60: #{tpu_custom_call.1} parent=55 // pred_fallthru
          _
        %s361 = smul.u32 4, %s25
        %p362 = scmp.lt.s32.totalorder %s361, 7
        %s363 = scalar_select %p362, %s361, 7
        %s364 = smul.addr %s363, 8
        %s365 = scalar_lea.vmem %s0, %s364
        %p366 = pneg %p46
        %p367 = pneg %p43
        %s368 = smul.u32 4, %s25
        %p369 = scmp.lt.s32.totalorder %s368, 7
        %s370 = scalar_select %p369, %s368, 7
        %s371 = smul.addr %s370, 2
        %s372 = smul.addr %s371, 8
        %s373 = scalar_lea.vmem %s1, %s372
        %p374 = pneg %p72
        %p375 = pneg %p69
        %p376 = scmp.lt.s32.totalorder %s25, 1
        %s377 = scalar_select %p376, %s25, 1
        %s378 = smul.addr %s377, 2
        %s379 = smul.addr %s378, 4
        %s380 = scalar_lea.vmem %s2, %s379
        %p381 = pneg %p98
        %p382 = pneg %p95
        %p383 = pneg %p119
        %p384 = pneg %p116
        %p385 = pneg %p140
        %p386 = pneg %p137
        %p387 = pneg %p161
        %p388 = pneg %p158
        %p389 = pneg %p182
        %p390 = pneg %p179
        %p391 = pneg %p203
        %p392 = pneg %p200
        %p393 = pneg %p224
        %p394 = pneg %p221
        %p395 = pneg %p250
        %p396 = pneg %p247
        %p397 = scmp.lt.s32.totalorder %s25, 1
        %s398 = scalar_select %p397, %s25, 1
        %s399 = smul.addr %s398, 4
        %s400 = smul.addr %s399, 8
        %s401 = scalar_lea.vmem %s9, %s400
        %p402 = pneg %p276
        %p403 = pneg %p273
        %p404 = scmp.lt.s32.totalorder %s25, 1
        %s405 = scalar_select %p404, %s25, 1
        %s406 = smul.addr %s405, 4
        %s407 = smul.addr %s406, 8
        %s408 = scalar_lea.vmem %s10, %s407
        %s409 = smul.u32 4, %s25
        %p410 = scmp.lt.s32.totalorder %s409, 7
        %s411 = scalar_select %p410, %s409, 7
        %s412 = smul.addr %s411, 8
        %s413 = scalar_lea.vmem %s0, %s412
        %s414 = smul.u32 4, %s25
        %s415 = smul.u32 4, %s25
        %p416 = scmp.lt.s32.totalorder %s415, 7
        %s417 = scalar_select %p416, %s415, 7
        %s418 = smul.addr %s417, 2
        %s419 = smul.addr %s418, 8
        %s420 = scalar_lea.vmem %s1, %s419
        %s421 = smul.u32 4, %s25
        %p422 = scmp.lt.s32.totalorder %s25, 1
        %s423 = scalar_select %p422, %s25, 1
        %s424 = smul.addr %s423, 2
        %s425 = smul.addr %s424, 4
        %s426 = scalar_lea.vmem %s2, %s425
        %p427 = scmp.lt.s32.totalorder %s25, 1
        %s428 = scalar_select %p427, %s25, 1
        %s429 = smul.addr %s428, 4
        %s430 = smul.addr %s429, 8
        %s431 = scalar_lea.vmem %s9, %s430
        %p432 = scmp.lt.s32.totalorder %s25, 1
        %s433 = scalar_select %p432, %s25, 1
        %s434 = smul.addr %s433, 4
        %s435 = smul.addr %s434, 8
        %s436 = scalar_lea.vmem %s10, %s435
        %v437 = vld [vmem:[%s413] sm:$0xff]
        %v438 = vld [vmem:[%s413 + $0x8] sm:$0xff]
        %v439 = vld [vmem:[%s413 + $0x10] sm:$0xff]
        %v440 = vld [vmem:[%s413 + $0x18] sm:$0xff]
        %v441 = vld [vmem:[%s3] sm:$0xff]
        %v442 = vld [vmem:[%s3 + $0x8] sm:$0xff]
        %v443 = vld [vmem:[%s3 + $0x10] sm:$0xff]
        %v444 = vld [vmem:[%s3 + $0x18] sm:$0xff]
        %v445 = vld [vmem:[%s3 + $0x20] sm:$0xff]
        %v446 = vld [vmem:[%s3 + $0x28] sm:$0xff]
        %v447 = vld [vmem:[%s3 + $0x30] sm:$0xff]
        %v448 = vld [vmem:[%s3 + $0x38] sm:$0xff]
        %v449 = vld [vmem:[%s4] sm:$0xf]
        %v451 = vlaneseq
        %v452 = vshrl.u32 %v451, 7
        %v453 = vsub.s32 0, %v452
        %v454 = vrot.slane %v449, %v453
        %v455 = vlaneseq
        %v456 = vshrl.u32 %v455, 7
        %v457 = vsub.s32 1, %v456
        %v458 = vrot.slane %v449, %v457
        %v459 = vlaneseq
        %v460 = vshrl.u32 %v459, 7
        %v461 = vsub.s32 2, %v460
        %v462 = vrot.slane %v449, %v461
        %v463 = vlaneseq
        %v464 = vshrl.u32 %v463, 7
        %v465 = vsub.s32 3, %v464
        %v466 = vrot.slane %v449, %v465
        %vm471 = vcmask 130048
        %v473 = vsel %vm471, %v437, 0
        %v476 = vsel %vm471, %v438, 0
        %v479 = vsel %vm471, %v439, 0
        %v482 = vsel %vm471, %v440, 0
        %484 = vmatprep.subr.mxu0 %v442
        %485 = vmatpush1.msra.mxu0 %v441
        %486 = vmatprep.subr.mxu0 %v446
        %487 = vmatpush1.msra.mxu0 %v445
        %488 = vmatprep.subr.mxu0 0.0
        %489 = vmatpush1.msra.mxu0 0.0
        %490 = vmatprep.subr.mxu0 0.0
        %491 = vmatpush1.msra.mxu0 0.0
        %492 = vmatprep.subr.mxu0 0.0
        %493 = vmatpush1.msra.mxu0 0.0
        %494 = vmatprep.subr.mxu0 0.0
        %495 = vmatpush1.msra.mxu0 0.0
        %496 = vmatprep.subr.mxu0 0.0
        %497 = vmatpush1.msra.mxu0 0.0
        %498 = vmatprep.subr.mxu0 0.0
        %499 = vmatpush1.msra.mxu0 0.0
        %500 = vmatprep.subr.mxu0 0.0
        %501 = vmatpush1.msra.mxu0 0.0
        %502 = vmatprep.subr.mxu0 0.0
        %503 = vmatpush1.msra.mxu0 0.0
        %504 = vmatprep.subr.mxu0 0.0
        %505 = vmatpush1.msra.mxu0 0.0
        %506 = vmatprep.subr.mxu0 0.0
        %507 = vmatpush1.msra.mxu0 0.0
        %508 = vmatprep.subr.mxu0 0.0
        %509 = vmatpush1.msra.mxu0 0.0
        %510 = vmatprep.subr.mxu0 0.0
        %511 = vmatpush1.msra.mxu0 0.0
        %512 = vmatprep.subr.mxu0 0.0
        %513 = vmatpush1.msra.mxu0 0.0
        %514 = vmatprep.subr.mxu0 0.0
        %515 = vmatpush1.msra.mxu0 0.0
        %516 = vmatprep.subr.mxu0 0.0
        %517 = vmatpush1.msra.mxu0 0.0
        %518 = vmatprep.subr.mxu0 0.0
        %519 = vmatpush1.msra.mxu0 0.0
        %520 = vmatprep.subr.mxu0 0.0
        %521 = vmatpush1.msra.mxu0 0.0
        %522 = vmatprep.subr.mxu0 0.0
        %523 = vmatpush1.msra.mxu0 0.0
        %524 = vmatprep.subr.mxu0 0.0
        %525 = vmatpush1.msra.mxu0 0.0
        %526 = vmatprep.subr.mxu0 0.0
        %527 = vmatpush1.msra.mxu0 0.0
        %528 = vmatprep.subr.mxu0 0.0
        %529 = vmatpush1.msra.mxu0 0.0
        %530 = vmatprep.subr.mxu0 0.0
        %531 = vmatpush1.msra.mxu0 0.0
        %532 = vmatprep.subr.mxu0 0.0
        %533 = vmatpush1.msra.mxu0 0.0
        %534 = vmatprep.subr.mxu0 0.0
        %535 = vmatpush1.msra.mxu0 0.0
        %536 = vmatprep.subr.mxu0 0.0
        %537 = vmatpush1.msra.mxu0 0.0
        %538 = vmatprep.subr.mxu0 0.0
        %539 = vmatpush1.msra.mxu0 0.0
        %540 = vmatprep.subr.mxu0 0.0
        %541 = vmatpush1.msra.mxu0 0.0
        %542 = vmatprep.subr.mxu0 0.0
        %543 = vmatpush1.msra.mxu0 0.0
        %544 = vmatprep.subr.mxu0 0.0
        %545 = vmatpush1.msra.mxu0 0.0
        %546 = vmatprep.subr.mxu0 0.0
        %547 = vmatpush1.msra.mxu0 0.0
        %548 = vmatprep.mubr.f32.mxu0 0.0
        %549 = vmatmul.mubr.f32.gmra.mrb[0].mxu0 %v473
        %v550 = vpop.f32.mrb[0].mxu0
        %v551 = vadd.f32 %v454, %v550
        %v552 = vpop.f32.mrb[0].mxu0
        %v553 = vadd.f32 %v458, %v552
        %554 = vmatprep.mubr.f32.mxu0 0.0
        %555 = vmatmul.mubr.f32.gmra.mrb[0].mxu0 %v476
        %v556 = vpop.f32.mrb[0].mxu0
        %v557 = vadd.f32 %v454, %v556
        %v558 = vpop.f32.mrb[0].mxu0
        %v559 = vadd.f32 %v458, %v558
        %560 = vmatprep.mubr.f32.mxu0 0.0
        %561 = vmatmul.mubr.f32.gmra.mrb[0].mxu0 %v479
        %v562 = vpop.f32.mrb[0].mxu0
        %v563 = vadd.f32 %v454, %v562
        %v564 = vpop.f32.mrb[0].mxu0
        %v565 = vadd.f32 %v458, %v564
        %566 = vmatprep.mubr.f32.mxu0 0.0
        %567 = vmatmul.mubr.f32.gmra.mrb[0].mxu0 %v482
        %v568 = vpop.f32.mrb[0].mxu0
        %v569 = vadd.f32 %v454, %v568
        %v570 = vpop.f32.mrb[0].mxu0
        %v571 = vadd.f32 %v458, %v570
        %572 = vdwg.mxu0
        %573 = vmatprep.subr.mxu0 %v444
        %574 = vmatpush1.msra.mxu0 %v443
        %575 = vmatprep.subr.mxu0 %v448
        %576 = vmatpush1.msra.mxu0 %v447
        %577 = vmatprep.subr.mxu0 0.0
        %578 = vmatpush1.msra.mxu0 0.0
        %579 = vmatprep.subr.mxu0 0.0
        %580 = vmatpush1.msra.mxu0 0.0
        %581 = vmatprep.subr.mxu0 0.0
        %582 = vmatpush1.msra.mxu0 0.0
        %583 = vmatprep.subr.mxu0 0.0
        %584 = vmatpush1.msra.mxu0 0.0
        %585 = vmatprep.subr.mxu0 0.0
        %586 = vmatpush1.msra.mxu0 0.0
        %587 = vmatprep.subr.mxu0 0.0
        %588 = vmatpush1.msra.mxu0 0.0
        %589 = vmatprep.subr.mxu0 0.0
        %590 = vmatpush1.msra.mxu0 0.0
        %591 = vmatprep.subr.mxu0 0.0
        %592 = vmatpush1.msra.mxu0 0.0
        %593 = vmatprep.subr.mxu0 0.0
        %594 = vmatpush1.msra.mxu0 0.0
        %595 = vmatprep.subr.mxu0 0.0
        %596 = vmatpush1.msra.mxu0 0.0
        %597 = vmatprep.subr.mxu0 0.0
        %598 = vmatpush1.msra.mxu0 0.0
        %599 = vmatprep.subr.mxu0 0.0
        %600 = vmatpush1.msra.mxu0 0.0
        %601 = vmatprep.subr.mxu0 0.0
        %602 = vmatpush1.msra.mxu0 0.0
        %603 = vmatprep.subr.mxu0 0.0
        %604 = vmatpush1.msra.mxu0 0.0
        %605 = vmatprep.subr.mxu0 0.0
        %606 = vmatpush1.msra.mxu0 0.0
        %607 = vmatprep.subr.mxu0 0.0
        %608 = vmatpush1.msra.mxu0 0.0
        %609 = vmatprep.subr.mxu0 0.0
        %610 = vmatpush1.msra.mxu0 0.0
        %611 = vmatprep.subr.mxu0 0.0
        %612 = vmatpush1.msra.mxu0 0.0
        %613 = vmatprep.subr.mxu0 0.0
        %614 = vmatpush1.msra.mxu0 0.0
        %615 = vmatprep.subr.mxu0 0.0
        %616 = vmatpush1.msra.mxu0 0.0
        %617 = vmatprep.subr.mxu0 0.0
        %618 = vmatpush1.msra.mxu0 0.0
        %619 = vmatprep.subr.mxu0 0.0
        %620 = vmatpush1.msra.mxu0 0.0
        %621 = vmatprep.subr.mxu0 0.0
        %622 = vmatpush1.msra.mxu0 0.0
        %623 = vmatprep.subr.mxu0 0.0
        %624 = vmatpush1.msra.mxu0 0.0
        %625 = vmatprep.subr.mxu0 0.0
        %626 = vmatpush1.msra.mxu0 0.0
        %627 = vmatprep.subr.mxu0 0.0
        %628 = vmatpush1.msra.mxu0 0.0
        %629 = vmatprep.subr.mxu0 0.0
        %630 = vmatpush1.msra.mxu0 0.0
        %631 = vmatprep.subr.mxu0 0.0
        %632 = vmatpush1.msra.mxu0 0.0
        %633 = vmatprep.subr.mxu0 0.0
        %634 = vmatpush1.msra.mxu0 0.0
        %635 = vmatprep.subr.mxu0 0.0
        %636 = vmatpush1.msra.mxu0 0.0
        %637 = vmatprep.mubr.f32.mxu0 0.0
        %638 = vmatmul.mubr.f32.gmra.mrb[0].mxu0 %v473
        %v639 = vpop.f32.mrb[0].mxu0
        %v640 = vadd.f32 %v462, %v639
        %v641 = vpop.f32.mrb[0].mxu0
        %v642 = vadd.f32 %v466, %v641
        %643 = vmatprep.mubr.f32.mxu0 0.0
        %644 = vmatmul.mubr.f32.gmra.mrb[0].mxu0 %v476
        %v645 = vpop.f32.mrb[0].mxu0
        %v646 = vadd.f32 %v462, %v645
        %v647 = vpop.f32.mrb[0].mxu0
        %v648 = vadd.f32 %v466, %v647
        %649 = vmatprep.mubr.f32.mxu0 0.0
        %650 = vmatmul.mubr.f32.gmra.mrb[0].mxu0 %v479
        %v651 = vpop.f32.mrb[0].mxu0
        %v652 = vadd.f32 %v462, %v651
        %v653 = vpop.f32.mrb[0].mxu0
        %v654 = vadd.f32 %v466, %v653
        %655 = vmatprep.mubr.f32.mxu0 0.0
        %656 = vmatmul.mubr.f32.gmra.mrb[0].mxu0 %v482
        %v657 = vpop.f32.mrb[0].mxu0
        %v658 = vadd.f32 %v462, %v657
        %v659 = vpop.f32.mrb[0].mxu0
        %v660 = vadd.f32 %v466, %v659
        %661 = vdwg.mxu0
        %v662 = vld [vmem:[%s426] sm:$0xff]
        %v663 = vld [vmem:[#allocation3] sm:$0xff]
        %v664 = vld [vmem:[#allocation3 + $0x8] sm:$0xff]
        %v665 = vld [vmem:[#allocation3 + $0x10] sm:$0xff]
        %v666 = vld [vmem:[#allocation3 + $0x18] sm:$0xff]
        %v667 = vld [vmem:[#allocation3 + $0x20] sm:$0xff]
        %v668 = vld [vmem:[#allocation3 + $0x28] sm:$0xff]
        %v669 = vld [vmem:[#allocation3 + $0x30] sm:$0xff]
        %v670 = vld [vmem:[#allocation3 + $0x38] sm:$0xff]
        %v671 = vld [vmem:[#allocation3 + $0x40] sm:$0xff]
        %v672 = vld [vmem:[#allocation3 + $0x48] sm:$0xff]
        %v673 = vld [vmem:[#allocation3 + $0x50] sm:$0xff]
        %v674 = vld [vmem:[#allocation3 + $0x58] sm:$0xff]
        %v675 = vld [vmem:[#allocation3 + $0x60] sm:$0xff]
        %v676 = vld [vmem:[#allocation3 + $0x68] sm:$0xff]
        %v677 = vld [vmem:[#allocation3 + $0x70] sm:$0xff]
        %v678 = vld [vmem:[#allocation3 + $0x78] sm:$0xff]
        %v679 = vld [vmem:[#allocation3 + $0x80] sm:$0xff]
        %v680 = vld [vmem:[#allocation3 + $0x88] sm:$0xff]
        %v681 = vld [vmem:[#allocation3 + $0x90] sm:$0xff]
        %v682 = vld [vmem:[#allocation3 + $0x98] sm:$0xff]
        %v683 = vld [vmem:[#allocation3 + $0xa0] sm:$0xff]
        %v684 = vld [vmem:[#allocation3 + $0xa8] sm:$0xff]
        %v685 = vld [vmem:[#allocation3 + $0xb0] sm:$0xff]
        %v686 = vld [vmem:[#allocation3 + $0xb8] sm:$0xff]
        %v687 = vld [vmem:[#allocation3 + $0xc0] sm:$0xff]
        %v688 = vld [vmem:[#allocation3 + $0xc8] sm:$0xff]
        %v689 = vld [vmem:[#allocation3 + $0xd0] sm:$0xff]
        %v690 = vld [vmem:[#allocation3 + $0xd8] sm:$0xff]
        %v691 = vld [vmem:[#allocation3 + $0xe0] sm:$0xff]
        %v692 = vld [vmem:[#allocation3 + $0xe8] sm:$0xff]
        %v693 = vld [vmem:[#allocation3 + $0xf0] sm:$0xff]
        %v694 = vld [vmem:[#allocation3 + $0xf8] sm:$0xff]
        %v695 = vld [vmem:[#allocation3 + $0x100] sm:$0xff]
        %v696 = vld [vmem:[#allocation3 + $0x108] sm:$0xff]
        %v697 = vld [vmem:[#allocation3 + $0x110] sm:$0xff]
        %v698 = vld [vmem:[#allocation3 + $0x118] sm:$0xff]
        %v699 = vld [vmem:[#allocation3 + $0x120] sm:$0xff]
        %v700 = vld [vmem:[#allocation3 + $0x128] sm:$0xff]
        %v701 = vld [vmem:[#allocation3 + $0x130] sm:$0xff]
        %v702 = vld [vmem:[#allocation3 + $0x138] sm:$0xff]
        %v703 = vld [vmem:[#allocation3 + $0x140] sm:$0xff]
        %v704 = vld [vmem:[#allocation3 + $0x148] sm:$0xff]
        %v705 = vld [vmem:[#allocation3 + $0x150] sm:$0xff]
        %v706 = vld [vmem:[#allocation3 + $0x158] sm:$0xff]
        %v707 = vld [vmem:[#allocation3 + $0x160] sm:$0xff]
        %v708 = vld [vmem:[#allocation3 + $0x168] sm:$0xff]
        %v709 = vld [vmem:[#allocation3 + $0x170] sm:$0xff]
        %v710 = vld [vmem:[#allocation3 + $0x178] sm:$0xff]
        %v711 = vld [vmem:[#allocation3 + $0x180] sm:$0xff]
        %v712 = vld [vmem:[#allocation3 + $0x188] sm:$0xff]
        %v713 = vld [vmem:[#allocation3 + $0x190] sm:$0xff]
        %v714 = vld [vmem:[#allocation3 + $0x198] sm:$0xff]
        %v715 = vld [vmem:[#allocation3 + $0x1a0] sm:$0xff]
        %v716 = vld [vmem:[#allocation3 + $0x1a8] sm:$0xff]
        %v717 = vld [vmem:[#allocation3 + $0x1b0] sm:$0xff]
        %v718 = vld [vmem:[#allocation3 + $0x1b8] sm:$0xff]
        %v719 = vld [vmem:[#allocation3 + $0x1c0] sm:$0xff]
        %v720 = vld [vmem:[#allocation3 + $0x1c8] sm:$0xff]
        %v721 = vld [vmem:[#allocation3 + $0x1d0] sm:$0xff]
        %v722 = vld [vmem:[#allocation3 + $0x1d8] sm:$0xff]
        %v723 = vld [vmem:[#allocation3 + $0x1e0] sm:$0xff]
        %v724 = vld [vmem:[#allocation3 + $0x1e8] sm:$0xff]
        %v725 = vld [vmem:[#allocation3 + $0x1f0] sm:$0xff]
        %v726 = vld [vmem:[#allocation3 + $0x1f8] sm:$0xff]
        %v727 = vld [vmem:[#allocation3 + $0x200] sm:$0xff]
        %v728 = vld [vmem:[#allocation3 + $0x208] sm:$0xff]
        %v729 = vld [vmem:[#allocation3 + $0x210] sm:$0xff]
        %v730 = vld [vmem:[#allocation3 + $0x218] sm:$0xff]
        %v731 = vld [vmem:[#allocation3 + $0x220] sm:$0xff]
        %v732 = vld [vmem:[#allocation3 + $0x228] sm:$0xff]
        %v733 = vld [vmem:[#allocation3 + $0x230] sm:$0xff]
        %v734 = vld [vmem:[#allocation3 + $0x238] sm:$0xff]
        %v735 = vld [vmem:[#allocation3 + $0x240] sm:$0xff]
        %v736 = vld [vmem:[#allocation3 + $0x248] sm:$0xff]
        %v737 = vld [vmem:[#allocation3 + $0x250] sm:$0xff]
        %v738 = vld [vmem:[#allocation3 + $0x258] sm:$0xff]
        %v739 = vld [vmem:[#allocation3 + $0x260] sm:$0xff]
        %v740 = vld [vmem:[#allocation3 + $0x268] sm:$0xff]
        %v741 = vld [vmem:[#allocation3 + $0x270] sm:$0xff]
        %v742 = vld [vmem:[#allocation3 + $0x278] sm:$0xff]
        %v743 = vld [vmem:[#allocation3 + $0x280] sm:$0xff]
        %v744 = vld [vmem:[#allocation3 + $0x288] sm:$0xff]
        %v745 = vld [vmem:[#allocation3 + $0x290] sm:$0xff]
        %v746 = vld [vmem:[#allocation3 + $0x298] sm:$0xff]
        %v747 = vld [vmem:[#allocation3 + $0x2a0] sm:$0xff]
        %v748 = vld [vmem:[#allocation3 + $0x2a8] sm:$0xff]
        %v749 = vld [vmem:[#allocation3 + $0x2b0] sm:$0xff]
        %v750 = vld [vmem:[#allocation3 + $0x2b8] sm:$0xff]
        %v751 = vld [vmem:[#allocation3 + $0x2c0] sm:$0xff]
        %v752 = vld [vmem:[#allocation3 + $0x2c8] sm:$0xff]
        %v753 = vld [vmem:[#allocation3 + $0x2d0] sm:$0xff]
        %v754 = vld [vmem:[#allocation3 + $0x2d8] sm:$0xff]
        %v755 = vld [vmem:[#allocation3 + $0x2e0] sm:$0xff]
        %v756 = vld [vmem:[#allocation3 + $0x2e8] sm:$0xff]
        %v757 = vld [vmem:[#allocation3 + $0x2f0] sm:$0xff]
        %v758 = vld [vmem:[#allocation3 + $0x2f8] sm:$0xff]
        %v759 = vld [vmem:[#allocation3 + $0x300] sm:$0xff]
        %v760 = vld [vmem:[#allocation3 + $0x308] sm:$0xff]
        %v761 = vld [vmem:[#allocation3 + $0x310] sm:$0xff]
        %v762 = vld [vmem:[#allocation3 + $0x318] sm:$0xff]
        %v763 = vld [vmem:[#allocation3 + $0x320] sm:$0xff]
        %v764 = vld [vmem:[#allocation3 + $0x328] sm:$0xff]
        %v765 = vld [vmem:[#allocation3 + $0x330] sm:$0xff]
        %v766 = vld [vmem:[#allocation3 + $0x338] sm:$0xff]
        %v767 = vld [vmem:[#allocation3 + $0x340] sm:$0xff]
        %v768 = vld [vmem:[#allocation3 + $0x348] sm:$0xff]
        %v769 = vld [vmem:[#allocation3 + $0x350] sm:$0xff]
        %v770 = vld [vmem:[#allocation3 + $0x358] sm:$0xff]
        %v771 = vld [vmem:[#allocation3 + $0x360] sm:$0xff]
        %v772 = vld [vmem:[#allocation3 + $0x368] sm:$0xff]
        %v773 = vld [vmem:[#allocation3 + $0x370] sm:$0xff]
        %v774 = vld [vmem:[#allocation3 + $0x378] sm:$0xff]
        %v775 = vld [vmem:[#allocation3 + $0x380] sm:$0xff]
        %v776 = vld [vmem:[#allocation3 + $0x388] sm:$0xff]
        %v777 = vld [vmem:[#allocation3 + $0x390] sm:$0xff]
        %v778 = vld [vmem:[#allocation3 + $0x398] sm:$0xff]
        %v779 = vld [vmem:[#allocation3 + $0x3a0] sm:$0xff]
        %v780 = vld [vmem:[#allocation3 + $0x3a8] sm:$0xff]
        %v781 = vld [vmem:[#allocation3 + $0x3b0] sm:$0xff]
        %v782 = vld [vmem:[#allocation3 + $0x3b8] sm:$0xff]
        %v783 = vld [vmem:[#allocation3 + $0x3c0] sm:$0xff]
        %v784 = vld [vmem:[#allocation3 + $0x3c8] sm:$0xff]
        %v785 = vld [vmem:[#allocation3 + $0x3d0] sm:$0xff]
        %v786 = vld [vmem:[#allocation3 + $0x3d8] sm:$0xff]
        %v787 = vld [vmem:[#allocation3 + $0x3e0] sm:$0xff]
        %v788 = vld [vmem:[#allocation3 + $0x3e8] sm:$0xff]
        %v789 = vld [vmem:[#allocation3 + $0x3f0] sm:$0xff]
        %v790 = vld [vmem:[#allocation3 + $0x3f8] sm:$0xff]
        %v791 = vld [vmem:[%s6] sm:$0xf]
        %v793 = vlaneseq
        %v794 = vshrl.u32 %v793, 7
        %v795 = vsub.s32 0, %v794
        %v796 = vrot.slane %v791, %v795
        %v797 = vlaneseq
        %v798 = vshrl.u32 %v797, 7
        %v799 = vsub.s32 1, %v798
        %v800 = vrot.slane %v791, %v799
        %v801 = vlaneseq
        %v802 = vshrl.u32 %v801, 7
        %v803 = vsub.s32 2, %v802
        %v804 = vrot.slane %v791, %v803
        %v805 = vlaneseq
        %v806 = vshrl.u32 %v805, 7
        %v807 = vsub.s32 3, %v806
        %v808 = vrot.slane %v791, %v807
        %v814 = vcombine.high %v662, %v662
        %816 = vmatprep.subr.mxu0 %v664
        %817 = vmatpush1.msra.mxu0 %v663
        %818 = vmatprep.subr.mxu0 %v668
        %819 = vmatpush1.msra.mxu0 %v667
        %820 = vmatprep.subr.mxu0 %v672
        %821 = vmatpush1.msra.mxu0 %v671
        %822 = vmatprep.subr.mxu0 %v676
        %823 = vmatpush1.msra.mxu0 %v675
        %824 = vmatprep.subr.mxu0 %v680
        %825 = vmatpush1.msra.mxu0 %v679
        %826 = vmatprep.subr.mxu0 %v684
        %827 = vmatpush1.msra.mxu0 %v683
        %828 = vmatprep.subr.mxu0 %v688
        %829 = vmatpush1.msra.mxu0 %v687
        %830 = vmatprep.subr.mxu0 %v692
        %831 = vmatpush1.msra.mxu0 %v691
        %832 = vmatprep.subr.mxu0 %v696
        %833 = vmatpush1.msra.mxu0 %v695
        %834 = vmatprep.subr.mxu0 %v700
        %835 = vmatpush1.msra.mxu0 %v699
        %836 = vmatprep.subr.mxu0 %v704
        %837 = vmatpush1.msra.mxu0 %v703
        %838 = vmatprep.subr.mxu0 %v708
        %839 = vmatpush1.msra.mxu0 %v707
        %840 = vmatprep.subr.mxu0 %v712
        %841 = vmatpush1.msra.mxu0 %v711
        %842 = vmatprep.subr.mxu0 %v716
        %843 = vmatpush1.msra.mxu0 %v715
        %844 = vmatprep.subr.mxu0 %v720
        %845 = vmatpush1.msra.mxu0 %v719
        %846 = vmatprep.subr.mxu0 %v724
        %847 = vmatpush1.msra.mxu0 %v723
        %848 = vmatprep.subr.mxu0 %v728
        %849 = vmatpush1.msra.mxu0 %v727
        %850 = vmatprep.subr.mxu0 %v732
        %851 = vmatpush1.msra.mxu0 %v731
        %852 = vmatprep.subr.mxu0 %v736
        %853 = vmatpush1.msra.mxu0 %v735
        %854 = vmatprep.subr.mxu0 %v740
        %855 = vmatpush1.msra.mxu0 %v739
        %856 = vmatprep.subr.mxu0 %v744
        %857 = vmatpush1.msra.mxu0 %v743
        %858 = vmatprep.subr.mxu0 %v748
        %859 = vmatpush1.msra.mxu0 %v747
        %860 = vmatprep.subr.mxu0 %v752
        %861 = vmatpush1.msra.mxu0 %v751
        %862 = vmatprep.subr.mxu0 %v756
        %863 = vmatpush1.msra.mxu0 %v755
        %864 = vmatprep.subr.mxu0 %v760
        %865 = vmatpush1.msra.mxu0 %v759
        %866 = vmatprep.subr.mxu0 %v764
        %867 = vmatpush1.msra.mxu0 %v763
        %868 = vmatprep.subr.mxu0 %v768
        %869 = vmatpush1.msra.mxu0 %v767
        %870 = vmatprep.subr.mxu0 %v772
        %871 = vmatpush1.msra.mxu0 %v771
        %872 = vmatprep.subr.mxu0 %v776
        %873 = vmatpush1.msra.mxu0 %v775
        %874 = vmatprep.subr.mxu0 %v780
        %875 = vmatpush1.msra.mxu0 %v779
        %876 = vmatprep.subr.mxu0 %v784
        %877 = vmatpush1.msra.mxu0 %v783
        %878 = vmatprep.subr.mxu0 %v788
        %879 = vmatpush1.msra.mxu0 %v787
        %880 = vmatprep.mubr.f32.mxu0 %v814
        %881 = vmatmul.mubr.f32.gmra.mrb[0].mxu0 %v662
        %v882 = vpop.f32.mrb[0].mxu0
        %v883 = vadd.f32 %v796, %v882
        %v884 = vpop.f32.mrb[0].mxu0
        %v885 = vadd.f32 %v800, %v884
        %886 = vdwg.mxu0
        %887 = vmatprep.subr.mxu0 %v666
        %888 = vmatpush1.msra.mxu0 %v665
        %889 = vmatprep.subr.mxu0 %v670
        %890 = vmatpush1.msra.mxu0 %v669
        %891 = vmatprep.subr.mxu0 %v674
        %892 = vmatpush1.msra.mxu0 %v673
        %893 = vmatprep.subr.mxu0 %v678
        %894 = vmatpush1.msra.mxu0 %v677
        %895 = vmatprep.subr.mxu0 %v682
        %896 = vmatpush1.msra.mxu0 %v681
        %897 = vmatprep.subr.mxu0 %v686
        %898 = vmatpush1.msra.mxu0 %v685
        %899 = vmatprep.subr.mxu0 %v690
        %900 = vmatpush1.msra.mxu0 %v689
        %901 = vmatprep.subr.mxu0 %v694
        %902 = vmatpush1.msra.mxu0 %v693
        %903 = vmatprep.subr.mxu0 %v698
        %904 = vmatpush1.msra.mxu0 %v697
        %905 = vmatprep.subr.mxu0 %v702
        %906 = vmatpush1.msra.mxu0 %v701
        %907 = vmatprep.subr.mxu0 %v706
        %908 = vmatpush1.msra.mxu0 %v705
        %909 = vmatprep.subr.mxu0 %v710
        %910 = vmatpush1.msra.mxu0 %v709
        %911 = vmatprep.subr.mxu0 %v714
        %912 = vmatpush1.msra.mxu0 %v713
        %913 = vmatprep.subr.mxu0 %v718
        %914 = vmatpush1.msra.mxu0 %v717
        %915 = vmatprep.subr.mxu0 %v722
        %916 = vmatpush1.msra.mxu0 %v721
        %917 = vmatprep.subr.mxu0 %v726
        %918 = vmatpush1.msra.mxu0 %v725
        %919 = vmatprep.subr.mxu0 %v730
        %920 = vmatpush1.msra.mxu0 %v729
        %921 = vmatprep.subr.mxu0 %v734
        %922 = vmatpush1.msra.mxu0 %v733
        %923 = vmatprep.subr.mxu0 %v738
        %924 = vmatpush1.msra.mxu0 %v737
        %925 = vmatprep.subr.mxu0 %v742
        %926 = vmatpush1.msra.mxu0 %v741
        %927 = vmatprep.subr.mxu0 %v746
        %928 = vmatpush1.msra.mxu0 %v745
        %929 = vmatprep.subr.mxu0 %v750
        %930 = vmatpush1.msra.mxu0 %v749
        %931 = vmatprep.subr.mxu0 %v754
        %932 = vmatpush1.msra.mxu0 %v753
        %933 = vmatprep.subr.mxu0 %v758
        %934 = vmatpush1.msra.mxu0 %v757
        %935 = vmatprep.subr.mxu0 %v762
        %936 = vmatpush1.msra.mxu0 %v761
        %937 = vmatprep.subr.mxu0 %v766
        %938 = vmatpush1.msra.mxu0 %v765
        %939 = vmatprep.subr.mxu0 %v770
        %940 = vmatpush1.msra.mxu0 %v769
        %941 = vmatprep.subr.mxu0 %v774
        %942 = vmatpush1.msra.mxu0 %v773
        %943 = vmatprep.subr.mxu0 %v778
        %944 = vmatpush1.msra.mxu0 %v777
        %945 = vmatprep.subr.mxu0 %v782
        %946 = vmatpush1.msra.mxu0 %v781
        %947 = vmatprep.subr.mxu0 %v786
        %948 = vmatpush1.msra.mxu0 %v785
        %949 = vmatprep.subr.mxu0 %v790
        %950 = vmatpush1.msra.mxu0 %v789
        %951 = vmatprep.mubr.f32.mxu0 %v814
        %952 = vmatmul.mubr.f32.gmra.mrb[0].mxu0 %v662
        %v953 = vpop.f32.mrb[0].mxu0
        %v954 = vadd.f32 %v804, %v953
        %v955 = vpop.f32.mrb[0].mxu0
        %v956 = vadd.f32 %v808, %v955
        %957 = vdwg.mxu0
        %v962 = vcombine.low %v883, %v885
        %v963 = vcombine.low %v954, %v956
        %v965 = vunpack.c.l.s4 1966171168
        %v966 = vunpack.c.0.s8 %v965
        %v967 = vlaneseq
        %v968 = vshrl.u32 %v967, 7
        %v969 = vsub.s32 %v966, %v968
        %v970 = vrot.slane %v962, %v969
        %v972 = vunpack.c.l.s4 1966171168
        %v973 = vunpack.c.0.s8 %v972
        %v974 = vlaneseq
        %v975 = vshrl.u32 %v974, 7
        %v976 = vsub.s32 %v973, %v975
        %v977 = vrot.slane %v963, %v976
        %v978 = vcombine.low %v970, %v977
        %v979 = vcombine.high %v970, %v977
        %v981 = vunpack.c.l.s4 1966171168
        %v982 = vunpack.c.0.s8 %v981
        %v983 = vlaneseq
        %v984 = vshrl.u32 %v983, 7
        %v985 = vsub.s32 %v982, %v984
        %v986 = vrot.slane %v978, %v985
        %v988 = vunpack.c.l.s4 1966171168
        %v989 = vunpack.c.0.s8 %v988
        %v990 = vlaneseq
        %v991 = vshrl.u32 %v990, 7
        %v992 = vsub.s32 %v989, %v991
        %v993 = vrot.slane %v979, %v992
        %v994 = vcombine.high %v986, %v986
        %v995 = vcombine.high %v993, %v993
        %v996 = vlaneseq
        %v997 = vshrl.u32 %v996, 7
        %v998 = vsub.s32 0, %v997
        %v999 = vrot.slane %v986, %v998
        %v1000 = vlaneseq
        %v1001 = vshrl.u32 %v1000, 7
        %v1002 = vsub.s32 1, %v1001
        %v1003 = vrot.slane %v986, %v1002
        %v1004 = vlaneseq
        %v1005 = vshrl.u32 %v1004, 7
        %v1006 = vsub.s32 2, %v1005
        %v1007 = vrot.slane %v986, %v1006
        %v1008 = vlaneseq
        %v1009 = vshrl.u32 %v1008, 7
        %v1010 = vsub.s32 3, %v1009
        %v1011 = vrot.slane %v986, %v1010
        %v1012 = vlaneseq
        %v1013 = vshrl.u32 %v1012, 7
        %v1014 = vsub.s32 0, %v1013
        %v1015 = vrot.slane %v993, %v1014
        %v1016 = vlaneseq
        %v1017 = vshrl.u32 %v1016, 7
        %v1018 = vsub.s32 1, %v1017
        %v1019 = vrot.slane %v993, %v1018
        %v1020 = vlaneseq
        %v1021 = vshrl.u32 %v1020, 7
        %v1022 = vsub.s32 2, %v1021
        %v1023 = vrot.slane %v993, %v1022
        %v1024 = vlaneseq
        %v1025 = vshrl.u32 %v1024, 7
        %v1026 = vsub.s32 3, %v1025
        %v1027 = vrot.slane %v993, %v1026
        %v1028 = vlaneseq
        %v1029 = vshrl.u32 %v1028, 7
        %v1030 = vsub.s32 0, %v1029
        %v1031 = vrot.slane %v994, %v1030
        %v1032 = vlaneseq
        %v1033 = vshrl.u32 %v1032, 7
        %v1034 = vsub.s32 1, %v1033
        %v1035 = vrot.slane %v994, %v1034
        %v1036 = vlaneseq
        %v1037 = vshrl.u32 %v1036, 7
        %v1038 = vsub.s32 2, %v1037
        %v1039 = vrot.slane %v994, %v1038
        %v1040 = vlaneseq
        %v1041 = vshrl.u32 %v1040, 7
        %v1042 = vsub.s32 3, %v1041
        %v1043 = vrot.slane %v994, %v1042
        %v1044 = vlaneseq
        %v1045 = vshrl.u32 %v1044, 7
        %v1046 = vsub.s32 0, %v1045
        %v1047 = vrot.slane %v995, %v1046
        %v1048 = vlaneseq
        %v1049 = vshrl.u32 %v1048, 7
        %v1050 = vsub.s32 1, %v1049
        %v1051 = vrot.slane %v995, %v1050
        %v1052 = vlaneseq
        %v1053 = vshrl.u32 %v1052, 7
        %v1054 = vsub.s32 2, %v1053
        %v1055 = vrot.slane %v995, %v1054
        %v1056 = vlaneseq
        %v1057 = vshrl.u32 %v1056, 7
        %v1058 = vsub.s32 3, %v1057
        %v1059 = vrot.slane %v995, %v1058
        %v1076 = vadd.f32 %v551, %v999
        %v1077 = vadd.f32 %v553, %v1003
        %v1078 = vadd.f32 %v640, %v1007
        %v1079 = vadd.f32 %v642, %v1011
        %v1080 = vadd.f32 %v557, %v1015
        %v1081 = vadd.f32 %v559, %v1019
        %v1082 = vadd.f32 %v646, %v1023
        %v1083 = vadd.f32 %v648, %v1027
        %v1084 = vadd.f32 %v563, %v1031
        %v1085 = vadd.f32 %v565, %v1035
        %v1086 = vadd.f32 %v652, %v1039
        %v1087 = vadd.f32 %v654, %v1043
        %v1088 = vadd.f32 %v569, %v1047
        %v1089 = vadd.f32 %v571, %v1051
        %v1090 = vadd.f32 %v658, %v1055
        %v1091 = vadd.f32 %v660, %v1059
        %v1092 = vtanh.pop %v1076
        %v1093 = vtanh.pop %v1077
        %v1094 = vtanh.pop %v1078
        %v1095 = vtanh.pop %v1079
        %v1096 = vtanh.pop %v1080
        %v1097 = vtanh.pop %v1081
        %v1098 = vtanh.pop %v1082
        %v1099 = vtanh.pop %v1083
        %v1100 = vtanh.pop %v1084
        %v1101 = vtanh.pop %v1085
        %v1102 = vtanh.pop %v1086
        %v1103 = vtanh.pop %v1087
        %v1104 = vtanh.pop %v1088
        %v1105 = vtanh.pop %v1089
        %v1106 = vtanh.pop %v1090
        %v1107 = vtanh.pop %v1091
        %v1108 = vld [vmem:[%s7] sm:$0xff]
        %v1109 = vld [vmem:[%s7 + $0x8] sm:$0xff]
        %v1110 = vld [vmem:[%s7 + $0x10] sm:$0xff]
        %v1111 = vld [vmem:[%s7 + $0x18] sm:$0xff]
        %v1112 = vld [vmem:[%s7 + $0x20] sm:$0xff]
        %v1113 = vld [vmem:[%s7 + $0x28] sm:$0xff]
        %v1114 = vld [vmem:[%s7 + $0x30] sm:$0xff]
        %v1115 = vld [vmem:[%s7 + $0x38] sm:$0xff]
        %v1116 = vld [vmem:[%s7 + $0x40] sm:$0xff]
        %v1117 = vld [vmem:[%s7 + $0x48] sm:$0xff]
        %v1118 = vld [vmem:[%s7 + $0x50] sm:$0xff]
        %v1119 = vld [vmem:[%s7 + $0x58] sm:$0xff]
        %v1120 = vld [vmem:[%s7 + $0x60] sm:$0xff]
        %v1121 = vld [vmem:[%s7 + $0x68] sm:$0xff]
        %v1122 = vld [vmem:[%s7 + $0x70] sm:$0xff]
        %v1123 = vld [vmem:[%s7 + $0x78] sm:$0xff]
        %v1124 = vld [vmem:[%s7 + $0x80] sm:$0xff]
        %v1125 = vld [vmem:[%s7 + $0x88] sm:$0xff]
        %v1126 = vld [vmem:[%s7 + $0x90] sm:$0xff]
        %v1127 = vld [vmem:[%s7 + $0x98] sm:$0xff]
        %v1128 = vld [vmem:[%s7 + $0xa0] sm:$0xff]
        %v1129 = vld [vmem:[%s7 + $0xa8] sm:$0xff]
        %v1130 = vld [vmem:[%s7 + $0xb0] sm:$0xff]
        %v1131 = vld [vmem:[%s7 + $0xb8] sm:$0xff]
        %v1132 = vld [vmem:[%s7 + $0xc0] sm:$0xff]
        %v1133 = vld [vmem:[%s7 + $0xc8] sm:$0xff]
        %v1134 = vld [vmem:[%s7 + $0xd0] sm:$0xff]
        %v1135 = vld [vmem:[%s7 + $0xd8] sm:$0xff]
        %v1136 = vld [vmem:[%s7 + $0xe0] sm:$0xff]
        %v1137 = vld [vmem:[%s7 + $0xe8] sm:$0xff]
        %v1138 = vld [vmem:[%s7 + $0xf0] sm:$0xff]
        %v1139 = vld [vmem:[%s7 + $0xf8] sm:$0xff]
        %v1140 = vld [vmem:[%s7 + $0x100] sm:$0xff]
        %v1141 = vld [vmem:[%s7 + $0x108] sm:$0xff]
        %v1142 = vld [vmem:[%s7 + $0x110] sm:$0xff]
        %v1143 = vld [vmem:[%s7 + $0x118] sm:$0xff]
        %v1144 = vld [vmem:[%s7 + $0x120] sm:$0xff]
        %v1145 = vld [vmem:[%s7 + $0x128] sm:$0xff]
        %v1146 = vld [vmem:[%s7 + $0x130] sm:$0xff]
        %v1147 = vld [vmem:[%s7 + $0x138] sm:$0xff]
        %v1148 = vld [vmem:[%s7 + $0x140] sm:$0xff]
        %v1149 = vld [vmem:[%s7 + $0x148] sm:$0xff]
        %v1150 = vld [vmem:[%s7 + $0x150] sm:$0xff]
        %v1151 = vld [vmem:[%s7 + $0x158] sm:$0xff]
        %v1152 = vld [vmem:[%s7 + $0x160] sm:$0xff]
        %v1153 = vld [vmem:[%s7 + $0x168] sm:$0xff]
        %v1154 = vld [vmem:[%s7 + $0x170] sm:$0xff]
        %v1155 = vld [vmem:[%s7 + $0x178] sm:$0xff]
        %v1156 = vld [vmem:[%s7 + $0x180] sm:$0xff]
        %v1157 = vld [vmem:[%s7 + $0x188] sm:$0xff]
        %v1158 = vld [vmem:[%s7 + $0x190] sm:$0xff]
        %v1159 = vld [vmem:[%s7 + $0x198] sm:$0xff]
        %v1160 = vld [vmem:[%s7 + $0x1a0] sm:$0xff]
        %v1161 = vld [vmem:[%s7 + $0x1a8] sm:$0xff]
        %v1162 = vld [vmem:[%s7 + $0x1b0] sm:$0xff]
        %v1163 = vld [vmem:[%s7 + $0x1b8] sm:$0xff]
        %v1164 = vld [vmem:[%s7 + $0x1c0] sm:$0xff]
        %v1165 = vld [vmem:[%s7 + $0x1c8] sm:$0xff]
        %v1166 = vld [vmem:[%s7 + $0x1d0] sm:$0xff]
        %v1167 = vld [vmem:[%s7 + $0x1d8] sm:$0xff]
        %v1168 = vld [vmem:[%s7 + $0x1e0] sm:$0xff]
        %v1169 = vld [vmem:[%s7 + $0x1e8] sm:$0xff]
        %v1170 = vld [vmem:[%s7 + $0x1f0] sm:$0xff]
        %v1171 = vld [vmem:[%s7 + $0x1f8] sm:$0xff]
        %v1172 = vld [vmem:[#allocation2] sm:$0x1]
        %s1173 = vtos %v1172
        %v1174 = vstv %s1173
        %1175 = vmatprep.subr.mxu0 0.0
        %1176 = vmatpush1.msra.mxu0 %v1108
        %1177 = vmatprep.subr.mxu0 0.0
        %1178 = vmatpush1.msra.mxu0 %v1109
        %1179 = vmatprep.subr.mxu0 0.0
        %1180 = vmatpush1.msra.mxu0 %v1110
        %1181 = vmatprep.subr.mxu0 0.0
        %1182 = vmatpush1.msra.mxu0 %v1111
        %1183 = vmatprep.subr.mxu0 0.0
        %1184 = vmatpush1.msra.mxu0 %v1112
        %1185 = vmatprep.subr.mxu0 0.0
        %1186 = vmatpush1.msra.mxu0 %v1113
        %1187 = vmatprep.subr.mxu0 0.0
        %1188 = vmatpush1.msra.mxu0 %v1114
        %1189 = vmatprep.subr.mxu0 0.0
        %1190 = vmatpush1.msra.mxu0 %v1115
        %1191 = vmatprep.subr.mxu0 0.0
        %1192 = vmatpush1.msra.mxu0 %v1116
        %1193 = vmatprep.subr.mxu0 0.0
        %1194 = vmatpush1.msra.mxu0 %v1117
        %1195 = vmatprep.subr.mxu0 0.0
        %1196 = vmatpush1.msra.mxu0 %v1118
        %1197 = vmatprep.subr.mxu0 0.0
        %1198 = vmatpush1.msra.mxu0 %v1119
        %1199 = vmatprep.subr.mxu0 0.0
        %1200 = vmatpush1.msra.mxu0 %v1120
        %1201 = vmatprep.subr.mxu0 0.0
        %1202 = vmatpush1.msra.mxu0 %v1121
        %1203 = vmatprep.subr.mxu0 0.0
        %1204 = vmatpush1.msra.mxu0 %v1122
        %1205 = vmatprep.subr.mxu0 0.0
        %1206 = vmatpush1.msra.mxu0 %v1123
        %1207 = vmatprep.subr.mxu0 0.0
        %1208 = vmatpush1.msra.mxu0 %v1124
        %1209 = vmatprep.subr.mxu0 0.0
        %1210 = vmatpush1.msra.mxu0 %v1125
        %1211 = vmatprep.subr.mxu0 0.0
        %1212 = vmatpush1.msra.mxu0 %v1126
        %1213 = vmatprep.subr.mxu0 0.0
        %1214 = vmatpush1.msra.mxu0 %v1127
        %1215 = vmatprep.subr.mxu0 0.0
        %1216 = vmatpush1.msra.mxu0 %v1128
        %1217 = vmatprep.subr.mxu0 0.0
        %1218 = vmatpush1.msra.mxu0 %v1129
        %1219 = vmatprep.subr.mxu0 0.0
        %1220 = vmatpush1.msra.mxu0 %v1130
        %1221 = vmatprep.subr.mxu0 0.0
        %1222 = vmatpush1.msra.mxu0 %v1131
        %1223 = vmatprep.subr.mxu0 0.0
        %1224 = vmatpush1.msra.mxu0 %v1132
        %1225 = vmatprep.subr.mxu0 0.0
        %1226 = vmatpush1.msra.mxu0 %v1133
        %1227 = vmatprep.subr.mxu0 0.0
        %1228 = vmatpush1.msra.mxu0 %v1134
        %1229 = vmatprep.subr.mxu0 0.0
        %1230 = vmatpush1.msra.mxu0 %v1135
        %1231 = vmatprep.subr.mxu0 0.0
        %1232 = vmatpush1.msra.mxu0 %v1136
        %1233 = vmatprep.subr.mxu0 0.0
        %1234 = vmatpush1.msra.mxu0 %v1137
        %1235 = vmatprep.subr.mxu0 0.0
        %1236 = vmatpush1.msra.mxu0 %v1138
        %1237 = vmatprep.subr.mxu0 0.0
        %1238 = vmatpush1.msra.mxu0 %v1139
        %1239 = vmatprep.mubr.f32.mxu0 %v1093
        %1240 = vmatmul.mubr.f32.gmra.mrb[0].mxu0 %v1092
        %v1241 = vpop.f32.mrb[0].mxu0
        %v1242 = vadd.f32 %v1174, %v1241
        %v1243 = vpop.f32.mrb[0].mxu0
        %1244 = vmatprep.mubr.f32.mxu0 %v1097
        %1245 = vmatmul.mubr.f32.gmra.mrb[0].mxu0 %v1096
        %v1246 = vpop.f32.mrb[0].mxu0
        %v1247 = vadd.f32 %v1174, %v1246
        %v1248 = vpop.f32.mrb[0].mxu0
        %1249 = vmatprep.mubr.f32.mxu0 %v1101
        %1250 = vmatmul.mubr.f32.gmra.mrb[0].mxu0 %v1100
        %v1251 = vpop.f32.mrb[0].mxu0
        %v1252 = vadd.f32 %v1174, %v1251
        %v1253 = vpop.f32.mrb[0].mxu0
        %1254 = vmatprep.mubr.f32.mxu0 %v1105
        %1255 = vmatmul.mubr.f32.gmra.mrb[0].mxu0 %v1104
        %v1256 = vpop.f32.mrb[0].mxu0
        %v1257 = vadd.f32 %v1174, %v1256
        %v1258 = vpop.f32.mrb[0].mxu0
        %1259 = vdwg.mxu0
        %1260 = vmatprep.subr.mxu0 0.0
        %1261 = vmatpush1.msra.mxu0 %v1140
        %1262 = vmatprep.subr.mxu0 0.0
        %1263 = vmatpush1.msra.mxu0 %v1141
        %1264 = vmatprep.subr.mxu0 0.0
        %1265 = vmatpush1.msra.mxu0 %v1142
        %1266 = vmatprep.subr.mxu0 0.0
        %1267 = vmatpush1.msra.mxu0 %v1143
        %1268 = vmatprep.subr.mxu0 0.0
        %1269 = vmatpush1.msra.mxu0 %v1144
        %1270 = vmatprep.subr.mxu0 0.0
        %1271 = vmatpush1.msra.mxu0 %v1145
        %1272 = vmatprep.subr.mxu0 0.0
        %1273 = vmatpush1.msra.mxu0 %v1146
        %1274 = vmatprep.subr.mxu0 0.0
        %1275 = vmatpush1.msra.mxu0 %v1147
        %1276 = vmatprep.subr.mxu0 0.0
        %1277 = vmatpush1.msra.mxu0 %v1148
        %1278 = vmatprep.subr.mxu0 0.0
        %1279 = vmatpush1.msra.mxu0 %v1149
        %1280 = vmatprep.subr.mxu0 0.0
        %1281 = vmatpush1.msra.mxu0 %v1150
        %1282 = vmatprep.subr.mxu0 0.0
        %1283 = vmatpush1.msra.mxu0 %v1151
        %1284 = vmatprep.subr.mxu0 0.0
        %1285 = vmatpush1.msra.mxu0 %v1152
        %1286 = vmatprep.subr.mxu0 0.0
        %1287 = vmatpush1.msra.mxu0 %v1153
        %1288 = vmatprep.subr.mxu0 0.0
        %1289 = vmatpush1.msra.mxu0 %v1154
        %1290 = vmatprep.subr.mxu0 0.0
        %1291 = vmatpush1.msra.mxu0 %v1155
        %1292 = vmatprep.subr.mxu0 0.0
        %1293 = vmatpush1.msra.mxu0 %v1156
        %1294 = vmatprep.subr.mxu0 0.0
        %1295 = vmatpush1.msra.mxu0 %v1157
        %1296 = vmatprep.subr.mxu0 0.0
        %1297 = vmatpush1.msra.mxu0 %v1158
        %1298 = vmatprep.subr.mxu0 0.0
        %1299 = vmatpush1.msra.mxu0 %v1159
        %1300 = vmatprep.subr.mxu0 0.0
        %1301 = vmatpush1.msra.mxu0 %v1160
        %1302 = vmatprep.subr.mxu0 0.0
        %1303 = vmatpush1.msra.mxu0 %v1161
        %1304 = vmatprep.subr.mxu0 0.0
        %1305 = vmatpush1.msra.mxu0 %v1162
        %1306 = vmatprep.subr.mxu0 0.0
        %1307 = vmatpush1.msra.mxu0 %v1163
        %1308 = vmatprep.subr.mxu0 0.0
        %1309 = vmatpush1.msra.mxu0 %v1164
        %1310 = vmatprep.subr.mxu0 0.0
        %1311 = vmatpush1.msra.mxu0 %v1165
        %1312 = vmatprep.subr.mxu0 0.0
        %1313 = vmatpush1.msra.mxu0 %v1166
        %1314 = vmatprep.subr.mxu0 0.0
        %1315 = vmatpush1.msra.mxu0 %v1167
        %1316 = vmatprep.subr.mxu0 0.0
        %1317 = vmatpush1.msra.mxu0 %v1168
        %1318 = vmatprep.subr.mxu0 0.0
        %1319 = vmatpush1.msra.mxu0 %v1169
        %1320 = vmatprep.subr.mxu0 0.0
        %1321 = vmatpush1.msra.mxu0 %v1170
        %1322 = vmatprep.subr.mxu0 0.0
        %1323 = vmatpush1.msra.mxu0 %v1171
        %1324 = vmatprep.mubr.f32.mxu0 %v1095
        %1325 = vmatmul.mubr.f32.gmra.mrb[0].mxu0 %v1094
        %v1326 = vpop.f32.mrb[0].mxu0
        %v1327 = vadd.f32 %v1242, %v1326
        %v1328 = vpop.f32.mrb[0].mxu0
        %1329 = vmatprep.mubr.f32.mxu0 %v1099
        %1330 = vmatmul.mubr.f32.gmra.mrb[0].mxu0 %v1098
        %v1331 = vpop.f32.mrb[0].mxu0
        %v1332 = vadd.f32 %v1247, %v1331
        %v1333 = vpop.f32.mrb[0].mxu0
        %1334 = vmatprep.mubr.f32.mxu0 %v1103
        %1335 = vmatmul.mubr.f32.gmra.mrb[0].mxu0 %v1102
        %v1336 = vpop.f32.mrb[0].mxu0
        %v1337 = vadd.f32 %v1252, %v1336
        %v1338 = vpop.f32.mrb[0].mxu0
        %1339 = vmatprep.mubr.f32.mxu0 %v1107
        %1340 = vmatmul.mubr.f32.gmra.mrb[0].mxu0 %v1106
        %v1341 = vpop.f32.mrb[0].mxu0
        %v1342 = vadd.f32 %v1257, %v1341
        %v1343 = vpop.f32.mrb[0].mxu0
        %1344 = vdwg.mxu0
        %v1345 = vsel %vm471, %v1327, -inf
        %1346 = vmax.xlane.f32.xlu0 %v1345
        %v1347 = vpop.xlane.xlu0 %1346
        %v1348 = vsel %vm471, %v1332, -inf
        %1349 = vmax.xlane.f32.xlu0 %v1348
        %v1350 = vpop.xlane.xlu0 %1349
        %v1351 = vsel %vm471, %v1337, -inf
        %1352 = vmax.xlane.f32.xlu0 %v1351
        %v1353 = vpop.xlane.xlu0 %1352
        %v1354 = vsel %vm471, %v1342, -inf
        %1355 = vmax.xlane.f32.xlu0 %v1354
        %v1356 = vpop.xlane.xlu0 %1355
        %v1357 = vsub.f32 %v1327, %v1347
        %v1358 = vsub.f32 %v1332, %v1350
        %v1359 = vsub.f32 %v1337, %v1353
        %v1360 = vsub.f32 %v1342, %v1356
        %v1361 = vmul.f32 %v1357, 1.442695
        %v1362 = vpow.pop %v1361
        %v1363 = vmul.f32 %v1358, 1.442695
        %v1364 = vpow.pop %v1363
        %v1365 = vmul.f32 %v1359, 1.442695
        %v1366 = vpow.pop %v1365
        %v1367 = vmul.f32 %v1360, 1.442695
        %v1368 = vpow.pop %v1367
        %v1369 = vsel %vm471, %v1362, 0.0
        %1370 = vadd.xlane.f32.xlu0 %v1369
        %v1371 = vpop.xlane.xlu0 %1370
        %v1372 = vsel %vm471, %v1364, 0.0
        %1373 = vadd.xlane.f32.xlu0 %v1372
        %v1374 = vpop.xlane.xlu0 %1373
        %v1375 = vsel %vm471, %v1366, 0.0
        %1376 = vadd.xlane.f32.xlu0 %v1375
        %v1377 = vpop.xlane.xlu0 %1376
        %v1378 = vsel %vm471, %v1368, 0.0
        %1379 = vadd.xlane.f32.xlu0 %v1378
        %v1380 = vpop.xlane.xlu0 %1379
        %v1381 = vrcp.pop %v1371
        %v1382 = vrcp.pop %v1374
        %v1383 = vrcp.pop %v1377
        %v1384 = vrcp.pop %v1380
        %v1385 = vmul.f32 %v1362, %v1381
        %v1386 = vmul.f32 %v1364, %v1382
        %v1387 = vmul.f32 %v1366, %v1383
        %v1388 = vmul.f32 %v1368, %v1384
        %v1389 = vld [vmem:[%s420] sm:$0xff]
        %v1390 = vld [vmem:[%s420 + $0x8] sm:$0xff]
        %v1391 = vld [vmem:[%s420 + $0x10] sm:$0xff]
        %v1392 = vld [vmem:[%s420 + $0x18] sm:$0xff]
        %v1393 = vld [vmem:[%s420 + $0x20] sm:$0xff]
        %v1394 = vld [vmem:[%s420 + $0x28] sm:$0xff]
        %v1395 = vld [vmem:[%s420 + $0x30] sm:$0xff]
        %v1396 = vld [vmem:[%s420 + $0x38] sm:$0xff]
        %v1398 = vsel %vm471, %v1385, 0
        %1400 = vmatprep.subr.mxu0 0.0
        %1401 = vmatpush1.msra.mxu0 %v1389
        %1402 = vmatprep.subr.mxu0 0.0
        %1403 = vmatpush1.msra.mxu0 %v1390
        %1404 = vmatprep.subr.mxu0 0.0
        %1405 = vmatpush1.msra.mxu0 0.0
        %1406 = vmatprep.subr.mxu0 0.0
        %1407 = vmatpush1.msra.mxu0 0.0
        %1408 = vmatprep.subr.mxu0 0.0
        %1409 = vmatpush1.msra.mxu0 0.0
        %1410 = vmatprep.subr.mxu0 0.0
        %1411 = vmatpush1.msra.mxu0 0.0
        %1412 = vmatprep.subr.mxu0 0.0
        %1413 = vmatpush1.msra.mxu0 0.0
        %1414 = vmatprep.subr.mxu0 0.0
        %1415 = vmatpush1.msra.mxu0 0.0
        %1416 = vmatprep.subr.mxu0 0.0
        %1417 = vmatpush1.msra.mxu0 0.0
        %1418 = vmatprep.subr.mxu0 0.0
        %1419 = vmatpush1.msra.mxu0 0.0
        %1420 = vmatprep.subr.mxu0 0.0
        %1421 = vmatpush1.msra.mxu0 0.0
        %1422 = vmatprep.subr.mxu0 0.0
        %1423 = vmatpush1.msra.mxu0 0.0
        %1424 = vmatprep.subr.mxu0 0.0
        %1425 = vmatpush1.msra.mxu0 0.0
        %1426 = vmatprep.subr.mxu0 0.0
        %1427 = vmatpush1.msra.mxu0 0.0
        %1428 = vmatprep.subr.mxu0 0.0
        %1429 = vmatpush1.msra.mxu0 0.0
        %1430 = vmatprep.subr.mxu0 0.0
        %1431 = vmatpush1.msra.mxu0 0.0
        %1432 = vmatprep.subr.mxu0 0.0
        %1433 = vmatpush1.msra.mxu0 0.0
        %1434 = vmatprep.subr.mxu0 0.0
        %1435 = vmatpush1.msra.mxu0 0.0
        %1436 = vmatprep.subr.mxu0 0.0
        %1437 = vmatpush1.msra.mxu0 0.0
        %1438 = vmatprep.subr.mxu0 0.0
        %1439 = vmatpush1.msra.mxu0 0.0
        %1440 = vmatprep.subr.mxu0 0.0
        %1441 = vmatpush1.msra.mxu0 0.0
        %1442 = vmatprep.subr.mxu0 0.0
        %1443 = vmatpush1.msra.mxu0 0.0
        %1444 = vmatprep.subr.mxu0 0.0
        %1445 = vmatpush1.msra.mxu0 0.0
        %1446 = vmatprep.subr.mxu0 0.0
        %1447 = vmatpush1.msra.mxu0 0.0
        %1448 = vmatprep.subr.mxu0 0.0
        %1449 = vmatpush1.msra.mxu0 0.0
        %1450 = vmatprep.subr.mxu0 0.0
        %1451 = vmatpush1.msra.mxu0 0.0
        %1452 = vmatprep.subr.mxu0 0.0
        %1453 = vmatpush1.msra.mxu0 0.0
        %1454 = vmatprep.subr.mxu0 0.0
        %1455 = vmatpush1.msra.mxu0 0.0
        %1456 = vmatprep.subr.mxu0 0.0
        %1457 = vmatpush1.msra.mxu0 0.0
        %1458 = vmatprep.subr.mxu0 0.0
        %1459 = vmatpush1.msra.mxu0 0.0
        %1460 = vmatprep.subr.mxu0 0.0
        %1461 = vmatpush1.msra.mxu0 0.0
        %1462 = vmatprep.subr.mxu0 0.0
        %1463 = vmatpush1.msra.mxu0 0.0
        %1464 = vmatprep.mubr.f32.mxu0 0.0
        %1465 = vmatmul.mubr.f32.gmra.mrb[0].mxu0 %v1398
        %v1466 = vpop.f32.mrb[0].mxu0
        %v1467 = vadd.f32 0.0, %v1466
        %v1468 = vpop.f32.mrb[0].mxu0
        %1469 = vdwg.mxu0
        %v1471 = vsel %vm471, %v1386, 0
        %1473 = vmatprep.subr.mxu0 0.0
        %1474 = vmatpush1.msra.mxu0 %v1391
        %1475 = vmatprep.subr.mxu0 0.0
        %1476 = vmatpush1.msra.mxu0 %v1392
        %1477 = vmatprep.subr.mxu0 0.0
        %1478 = vmatpush1.msra.mxu0 0.0
        %1479 = vmatprep.subr.mxu0 0.0
        %1480 = vmatpush1.msra.mxu0 0.0
        %1481 = vmatprep.subr.mxu0 0.0
        %1482 = vmatpush1.msra.mxu0 0.0
        %1483 = vmatprep.subr.mxu0 0.0
        %1484 = vmatpush1.msra.mxu0 0.0
        %1485 = vmatprep.subr.mxu0 0.0
        %1486 = vmatpush1.msra.mxu0 0.0
        %1487 = vmatprep.subr.mxu0 0.0
        %1488 = vmatpush1.msra.mxu0 0.0
        %1489 = vmatprep.subr.mxu0 0.0
        %1490 = vmatpush1.msra.mxu0 0.0
        %1491 = vmatprep.subr.mxu0 0.0
        %1492 = vmatpush1.msra.mxu0 0.0
        %1493 = vmatprep.subr.mxu0 0.0
        %1494 = vmatpush1.msra.mxu0 0.0
        %1495 = vmatprep.subr.mxu0 0.0
        %1496 = vmatpush1.msra.mxu0 0.0
        %1497 = vmatprep.subr.mxu0 0.0
        %1498 = vmatpush1.msra.mxu0 0.0
        %1499 = vmatprep.subr.mxu0 0.0
        %1500 = vmatpush1.msra.mxu0 0.0
        %1501 = vmatprep.subr.mxu0 0.0
        %1502 = vmatpush1.msra.mxu0 0.0
        %1503 = vmatprep.subr.mxu0 0.0
        %1504 = vmatpush1.msra.mxu0 0.0
        %1505 = vmatprep.subr.mxu0 0.0
        %1506 = vmatpush1.msra.mxu0 0.0
        %1507 = vmatprep.subr.mxu0 0.0
        %1508 = vmatpush1.msra.mxu0 0.0
        %1509 = vmatprep.subr.mxu0 0.0
        %1510 = vmatpush1.msra.mxu0 0.0
        %1511 = vmatprep.subr.mxu0 0.0
        %1512 = vmatpush1.msra.mxu0 0.0
        %1513 = vmatprep.subr.mxu0 0.0
        %1514 = vmatpush1.msra.mxu0 0.0
        %1515 = vmatprep.subr.mxu0 0.0
        %1516 = vmatpush1.msra.mxu0 0.0
        %1517 = vmatprep.subr.mxu0 0.0
        %1518 = vmatpush1.msra.mxu0 0.0
        %1519 = vmatprep.subr.mxu0 0.0
        %1520 = vmatpush1.msra.mxu0 0.0
        %1521 = vmatprep.subr.mxu0 0.0
        %1522 = vmatpush1.msra.mxu0 0.0
        %1523 = vmatprep.subr.mxu0 0.0
        %1524 = vmatpush1.msra.mxu0 0.0
        %1525 = vmatprep.subr.mxu0 0.0
        %1526 = vmatpush1.msra.mxu0 0.0
        %1527 = vmatprep.subr.mxu0 0.0
        %1528 = vmatpush1.msra.mxu0 0.0
        %1529 = vmatprep.subr.mxu0 0.0
        %1530 = vmatpush1.msra.mxu0 0.0
        %1531 = vmatprep.subr.mxu0 0.0
        %1532 = vmatpush1.msra.mxu0 0.0
        %1533 = vmatprep.subr.mxu0 0.0
        %1534 = vmatpush1.msra.mxu0 0.0
        %1535 = vmatprep.subr.mxu0 0.0
        %1536 = vmatpush1.msra.mxu0 0.0
        %1537 = vmatprep.mubr.f32.mxu0 0.0
        %1538 = vmatmul.mubr.f32.gmra.mrb[0].mxu0 %v1471
        %v1539 = vpop.f32.mrb[0].mxu0
        %v1540 = vadd.f32 0.0, %v1539
        %v1541 = vpop.f32.mrb[0].mxu0
        %1542 = vdwg.mxu0
        %v1544 = vsel %vm471, %v1387, 0
        %1546 = vmatprep.subr.mxu0 0.0
        %1547 = vmatpush1.msra.mxu0 %v1393
        %1548 = vmatprep.subr.mxu0 0.0
        %1549 = vmatpush1.msra.mxu0 %v1394
        %1550 = vmatprep.subr.mxu0 0.0
        %1551 = vmatpush1.msra.mxu0 0.0
        %1552 = vmatprep.subr.mxu0 0.0
        %1553 = vmatpush1.msra.mxu0 0.0
        %1554 = vmatprep.subr.mxu0 0.0
        %1555 = vmatpush1.msra.mxu0 0.0
        %1556 = vmatprep.subr.mxu0 0.0
        %1557 = vmatpush1.msra.mxu0 0.0
        %1558 = vmatprep.subr.mxu0 0.0
        %1559 = vmatpush1.msra.mxu0 0.0
        %1560 = vmatprep.subr.mxu0 0.0
        %1561 = vmatpush1.msra.mxu0 0.0
        %1562 = vmatprep.subr.mxu0 0.0
        %1563 = vmatpush1.msra.mxu0 0.0
        %1564 = vmatprep.subr.mxu0 0.0
        %1565 = vmatpush1.msra.mxu0 0.0
        %1566 = vmatprep.subr.mxu0 0.0
        %1567 = vmatpush1.msra.mxu0 0.0
        %1568 = vmatprep.subr.mxu0 0.0
        %1569 = vmatpush1.msra.mxu0 0.0
        %1570 = vmatprep.subr.mxu0 0.0
        %1571 = vmatpush1.msra.mxu0 0.0
        %1572 = vmatprep.subr.mxu0 0.0
        %1573 = vmatpush1.msra.mxu0 0.0
        %1574 = vmatprep.subr.mxu0 0.0
        %1575 = vmatpush1.msra.mxu0 0.0
        %1576 = vmatprep.subr.mxu0 0.0
        %1577 = vmatpush1.msra.mxu0 0.0
        %1578 = vmatprep.subr.mxu0 0.0
        %1579 = vmatpush1.msra.mxu0 0.0
        %1580 = vmatprep.subr.mxu0 0.0
        %1581 = vmatpush1.msra.mxu0 0.0
        %1582 = vmatprep.subr.mxu0 0.0
        %1583 = vmatpush1.msra.mxu0 0.0
        %1584 = vmatprep.subr.mxu0 0.0
        %1585 = vmatpush1.msra.mxu0 0.0
        %1586 = vmatprep.subr.mxu0 0.0
        %1587 = vmatpush1.msra.mxu0 0.0
        %1588 = vmatprep.subr.mxu0 0.0
        %1589 = vmatpush1.msra.mxu0 0.0
        %1590 = vmatprep.subr.mxu0 0.0
        %1591 = vmatpush1.msra.mxu0 0.0
        %1592 = vmatprep.subr.mxu0 0.0
        %1593 = vmatpush1.msra.mxu0 0.0
        %1594 = vmatprep.subr.mxu0 0.0
        %1595 = vmatpush1.msra.mxu0 0.0
        %1596 = vmatprep.subr.mxu0 0.0
        %1597 = vmatpush1.msra.mxu0 0.0
        %1598 = vmatprep.subr.mxu0 0.0
        %1599 = vmatpush1.msra.mxu0 0.0
        %1600 = vmatprep.subr.mxu0 0.0
        %1601 = vmatpush1.msra.mxu0 0.0
        %1602 = vmatprep.subr.mxu0 0.0
        %1603 = vmatpush1.msra.mxu0 0.0
        %1604 = vmatprep.subr.mxu0 0.0
        %1605 = vmatpush1.msra.mxu0 0.0
        %1606 = vmatprep.subr.mxu0 0.0
        %1607 = vmatpush1.msra.mxu0 0.0
        %1608 = vmatprep.subr.mxu0 0.0
        %1609 = vmatpush1.msra.mxu0 0.0
        %1610 = vmatprep.mubr.f32.mxu0 0.0
        %1611 = vmatmul.mubr.f32.gmra.mrb[0].mxu0 %v1544
        %v1612 = vpop.f32.mrb[0].mxu0
        %v1613 = vadd.f32 0.0, %v1612
        %v1614 = vpop.f32.mrb[0].mxu0
        %1615 = vdwg.mxu0
        %v1617 = vsel %vm471, %v1388, 0
        %1619 = vmatprep.subr.mxu0 0.0
        %1620 = vmatpush1.msra.mxu0 %v1395
        %1621 = vmatprep.subr.mxu0 0.0
        %1622 = vmatpush1.msra.mxu0 %v1396
        %1623 = vmatprep.subr.mxu0 0.0
        %1624 = vmatpush1.msra.mxu0 0.0
        %1625 = vmatprep.subr.mxu0 0.0
        %1626 = vmatpush1.msra.mxu0 0.0
        %1627 = vmatprep.subr.mxu0 0.0
        %1628 = vmatpush1.msra.mxu0 0.0
        %1629 = vmatprep.subr.mxu0 0.0
        %1630 = vmatpush1.msra.mxu0 0.0
        %1631 = vmatprep.subr.mxu0 0.0
        %1632 = vmatpush1.msra.mxu0 0.0
        %1633 = vmatprep.subr.mxu0 0.0
        %1634 = vmatpush1.msra.mxu0 0.0
        %1635 = vmatprep.subr.mxu0 0.0
        %1636 = vmatpush1.msra.mxu0 0.0
        %1637 = vmatprep.subr.mxu0 0.0
        %1638 = vmatpush1.msra.mxu0 0.0
        %1639 = vmatprep.subr.mxu0 0.0
        %1640 = vmatpush1.msra.mxu0 0.0
        %1641 = vmatprep.subr.mxu0 0.0
        %1642 = vmatpush1.msra.mxu0 0.0
        %1643 = vmatprep.subr.mxu0 0.0
        %1644 = vmatpush1.msra.mxu0 0.0
        %1645 = vmatprep.subr.mxu0 0.0
        %1646 = vmatpush1.msra.mxu0 0.0
        %1647 = vmatprep.subr.mxu0 0.0
        %1648 = vmatpush1.msra.mxu0 0.0
        %1649 = vmatprep.subr.mxu0 0.0
        %1650 = vmatpush1.msra.mxu0 0.0
        %1651 = vmatprep.subr.mxu0 0.0
        %1652 = vmatpush1.msra.mxu0 0.0
        %1653 = vmatprep.subr.mxu0 0.0
        %1654 = vmatpush1.msra.mxu0 0.0
        %1655 = vmatprep.subr.mxu0 0.0
        %1656 = vmatpush1.msra.mxu0 0.0
        %1657 = vmatprep.subr.mxu0 0.0
        %1658 = vmatpush1.msra.mxu0 0.0
        %1659 = vmatprep.subr.mxu0 0.0
        %1660 = vmatpush1.msra.mxu0 0.0
        %1661 = vmatprep.subr.mxu0 0.0
        %1662 = vmatpush1.msra.mxu0 0.0
        %1663 = vmatprep.subr.mxu0 0.0
        %1664 = vmatpush1.msra.mxu0 0.0
        %1665 = vmatprep.subr.mxu0 0.0
        %1666 = vmatpush1.msra.mxu0 0.0
        %1667 = vmatprep.subr.mxu0 0.0
        %1668 = vmatpush1.msra.mxu0 0.0
        %1669 = vmatprep.subr.mxu0 0.0
        %1670 = vmatpush1.msra.mxu0 0.0
        %1671 = vmatprep.subr.mxu0 0.0
        %1672 = vmatpush1.msra.mxu0 0.0
        %1673 = vmatprep.subr.mxu0 0.0
        %1674 = vmatpush1.msra.mxu0 0.0
        %1675 = vmatprep.subr.mxu0 0.0
        %1676 = vmatpush1.msra.mxu0 0.0
        %1677 = vmatprep.subr.mxu0 0.0
        %1678 = vmatpush1.msra.mxu0 0.0
        %1679 = vmatprep.subr.mxu0 0.0
        %1680 = vmatpush1.msra.mxu0 0.0
        %1681 = vmatprep.subr.mxu0 0.0
        %1682 = vmatpush1.msra.mxu0 0.0
        %1683 = vmatprep.mubr.f32.mxu0 0.0
        %1684 = vmatmul.mubr.f32.gmra.mrb[0].mxu0 %v1617
        %v1685 = vpop.f32.mrb[0].mxu0
        %v1686 = vadd.f32 0.0, %v1685
        %v1687 = vpop.f32.mrb[0].mxu0
        %1688 = vdwg.mxu0
        %1689 = vst.msk [vmem:[%s431] sm:$0xff] %vm471, %v1467
        %1690 = vst.msk [vmem:[%s431 + $0x8] sm:$0xff] %vm471, %v1540
        %1691 = vst.msk [vmem:[%s431 + $0x10] sm:$0xff] %vm471, %v1613
        %1692 = vst.msk [vmem:[%s431 + $0x18] sm:$0xff] %vm471, %v1686
        %1693 = vst.msk [vmem:[%s436] sm:$0xff] %vm471, %v1385
        %1694 = vst.msk [vmem:[%s436 + $0x8] sm:$0xff] %vm471, %v1386
        %1695 = vst.msk [vmem:[%s436 + $0x10] sm:$0xff] %vm471, %v1387
        %1696 = vst.msk [vmem:[%s436 + $0x18] sm:$0xff] %vm471, %v1388
        %p1697 = scmp.lt.s32.totalorder %s25, 1
        %s1698 = scalar_select %p1697, %s25, 1
        %s1699 = smul.addr %s1698, 4
        %s1700 = smul.addr %s1699, 8
        %s1701 = scalar_lea.vmem %s9, %s1700
        %p1702 = scmp.lt.s32.totalorder %s25, 1
        %s1703 = scalar_select %p1702, %s25, 1
        %s1704 = smul.addr %s1703, 4
        %s1705 = smul.addr %s1704, 8
        %s1706 = scalar_lea.vmem %s10, %s1705
        // Predicated region
        $region61: #{tpu_custom_call.1} parent=55 // pred_check
          %p1707 = pneg %p247
        $region62: #{tpu_custom_call.1} parent=55 // pred_check_branch
          %1709 = sbr.rel (%p1707) target = $region64
        $region63: #{tpu_custom_call.1} parent=55 // pred_region
          _
        $region64: #{tpu_custom_call.1} parent=55 // pred_fallthru
          _
        // Predicated region
        $region65: #{tpu_custom_call.1} parent=55 // pred_check
          %p1710 = pneg %p273
        $region66: #{tpu_custom_call.1} parent=55 // pred_check_branch
          %1712 = sbr.rel (%p1710) target = $region68
        $region67: #{tpu_custom_call.1} parent=55 // pred_region
          _
        $region68: #{tpu_custom_call.1} parent=55 // pred_fallthru
          _
      $region56: #{tpu_custom_call.1} parent=5 // pred_fallthru
        _
      %p1713 = scmp.le.s32.totalorder 2, %s20
      // Predicated region
      $region69: #{tpu_custom_call.1} parent=5 // pred_check
        %p1714 = pneg %p1713
      $region70: #{tpu_custom_call.1} parent=5 // pred_check_branch
        %1716 = sbr.rel (%p1714) target = $region72
      $region71: #{tpu_custom_call.1} parent=5 // pred_region
        %s1717 = ssub.s32 %s20, 2
        // Predicated region
        $region73: #{tpu_custom_call.1} parent=71 // pred_check
          %p1718 = pneg %p253
        $region74: #{tpu_custom_call.1} parent=71 // pred_check_branch
          %1720 = sbr.rel (%p1718) target = $region76
        $region75: #{tpu_custom_call.1} parent=71 // pred_region
          %p1721 = scmp.lt.s32.totalorder %s26, 1
          %s1722 = scalar_select %p1721, %s26, 1
          %s1723 = smul.addr %s1722, 4
          %s1724 = smul.addr %s1723, 8
          %s1725 = scalar_lea.vmem %s9, %s1724
        $region76: #{tpu_custom_call.1} parent=71 // pred_fallthru
          _
        // Predicated region
        $region77: #{tpu_custom_call.1} parent=71 // pred_check
          %p1726 = pneg %p279
        $region78: #{tpu_custom_call.1} parent=71 // pred_check_branch
          %1728 = sbr.rel (%p1726) target = $region80
        $region79: #{tpu_custom_call.1} parent=71 // pred_region
          %p1729 = scmp.lt.s32.totalorder %s26, 1
          %s1730 = scalar_select %p1729, %s26, 1
          %s1731 = smul.addr %s1730, 4
          %s1732 = smul.addr %s1731, 8
          %s1733 = scalar_lea.vmem %s10, %s1732
        $region80: #{tpu_custom_call.1} parent=71 // pred_fallthru
          _
      $region72: #{tpu_custom_call.1} parent=5 // pred_fallthru
        _
    $region6: #{tpu_custom_call.1} parent=1 // loop_footer
      %s24 = sadd.s32 1, %s20
    $region7: #{tpu_custom_call.1} parent=1 // loop_footer_branch
      %19 = sbr.rel target = $region3
    $region8: #{tpu_custom_call.1} parent=1 // loop_exit
      _
    %1734 = vsyncpa [#allocation4], 1
    %s1735 = scalar_lea.sflag [#allocation4], 1
    %1736 = vsyncpa %s1735, 1

</llo_original>
